<compile_context>
chip_gen: v7x
topology: tpu7x:2x2x1
jax: 0.10.0
libtpu: 0.0.40
codegen_flags: <defaults>
</compile_context>

<pallas_src>
import functools

import jax
import jax.numpy as jnp
from jax.experimental import pallas as pl
from jax.experimental.pallas import tpu as pltpu

# ---- graph-feature vocabulary sizes (from Model.py) ----
num_bond_isAromatic = 2
num_bond_isInRing = 2
num_bond_type = 5
num_Aro = 2
num_Hbrid = 8
num_atom_type = 119
num_charge = 3
num_degree = 7


def _rup(x, m):
    return ((x + m - 1) // m) * m


def _pad2(x, shape):
    return jnp.pad(x, [(0, t - s) for s, t in zip(x.shape, shape)])


def _softplus(x):
    # PyTorch nn.Softplus(beta=1, threshold=20)
    return jnp.where(x > 20.0, x, jnp.log1p(jnp.exp(jnp.minimum(x, 20.0))))


# -------------------- fused kernel: all GINE layers + readout --------------------
def _gin_fused_kernel(num_graphs,
                      last_ref,                     # SMEM (B,) i32   scalar prefetch
                      adj_ref, h0_ref,              # VMEM-resident (single copy)
                      eaggr_ref, w1_ref, b1_ref, w2_ref, b2_ref,   # streamed per layer
                      wf_ref, bf_ref, cond_ref,     # VMEM-resident readout params
                      wp1_ref, bp1_ref, wp2_ref, bp2_ref, wp3_ref, bp3_ref,
                      out_ref,                      # (Bp, 128) f32, written at last layer
                      h_acc):                       # VMEM scratch (Np, Dp) f32 carry
    l = pl.program_id(0)
    nl = pl.num_programs(0)

    # Layer 0: seed the node-feature carry from h0 (resident; read once).
    @pl.when(l == 0)
    def _():
        h_acc[...] = h0_ref[...]

    h = h_acc[...]                                                 # (Np, Dp) f32

    # GINE aggregation: sum_{j->i} (h_j + e_ij)  ==  Adj @ h + (A @ eemb)_l
    aggr = jnp.dot(adj_ref[...], h.astype(jnp.bfloat16),
                   preferred_element_type=jnp.float32) + eaggr_ref[0].astype(jnp.float32)
    # Update MLP: Linear(D,2D) -> ReLU -> Linear(2D,D); BatchNorm folded into W2/b2.
    z = jnp.maximum(jnp.dot(aggr.astype(jnp.bfloat16), w1_ref[0],
                            preferred_element_type=jnp.float32) + b1_ref[0], 0.0)
    hn = jnp.maximum(jnp.dot(z.astype(jnp.bfloat16), w2_ref[0],
                             preferred_element_type=jnp.float32) + b2_ref[0], 0.0)
    # (F.relu above; dropout is a no-op in eval mode / drop_ratio=0.)

    # Carry to the next layer (single (Np,Dp) store; skipped on the final layer).
    @pl.when(l < nl - 1)
    def _():
        h_acc[...] = hn

    # Final layer: fused readout — extract last node of each graph, feat_lin,
    # cat with cond, pred head.  No HBM round-trip of h.
    @pl.when(l == nl - 1)
    def _():
        Bp = out_ref.shape[0]
        Np = adj_ref.shape[0]
        # In-kernel one-hot selector built from the scalar-prefetched indices.
        row_ids = jax.lax.broadcasted_iota(jnp.int32, (Bp, Np), 0)
        col_ids = jax.lax.broadcasted_iota(jnp.int32, (Bp, Np), 1)
        onehot = jnp.zeros((Bp, Np), jnp.float32)
        for i in range(num_graphs):            # static python int; padded rows stay 0
            onehot = onehot + jnp.where(
                jnp.logical_and(row_ids == i, col_ids == last_ref[i]), 1.0, 0.0)
        g = jnp.dot(onehot.astype(jnp.bfloat16), hn.astype(jnp.bfloat16),
                    preferred_element_type=jnp.float32)            # (Bp, Dp)
        # extract commutes with the (linear) feat_lin, so feat_lin runs on (Bp, .)
        feat = jnp.dot(g.astype(jnp.bfloat16), wf_ref[...],
                       preferred_element_type=jnp.float32) + bf_ref[...]
        x = feat + cond_ref[...]        # cat([h_pair, cond]) via the padded cond slab
        z1 = _softplus(jnp.dot(x.astype(jnp.bfloat16), wp1_ref[...],
                               preferred_element_type=jnp.float32) + bp1_ref[...])
        z2 = _softplus(jnp.dot(z1.astype(jnp.bfloat16), wp2_ref[...],
                               preferred_element_type=jnp.float32) + bp2_ref[...])
        out_ref[...] = jnp.dot(z2.astype(jnp.bfloat16), wp3_ref[...],
                               preferred_element_type=jnp.float32) + bp3_ref[...]


def gin_fused(last_idx, adj, h0, eaggrs, w1s, b1s, w2s, b2s,
              wf, bf, cond_slab, wp1, bp1, wp2, bp2, wp3, bp3, *, num_graphs):
    L, Np, Dp = eaggrs.shape
    Hp = w1s.shape[2]
    Bp = cond_slab.shape[0]

    def resident():
        # Grid-invariant operand: whole array lives in VMEM for the kernel's
        # lifetime, copied once (no per-step DMA, no double-buffering).
        return pl.BlockSpec(memory_space=pltpu.MemorySpace.VMEM)

    flops = (L * 2 * (Np * Np * Dp + Np * Dp * Hp + Np * Hp * Dp)
             + 2 * (Bp * Np * Dp + Bp * Dp * wf.shape[1]
                    + Bp * wp1.shape[0] * wp1.shape[1]
                    + Bp * wp2.shape[0] * wp2.shape[1]
                    + Bp * wp3.shape[0] * wp3.shape[1]))
    transcendentals = Bp * (wp1.shape[1] + wp2.shape[1])
    bytes_accessed = (adj.size * 2 + h0.size * 4
                      + (eaggrs.size + w1s.size + w2s.size) * 2
                      + (b1s.size + b2s.size) * 4
                      + (wf.size + wp1.size + wp2.size + wp3.size) * 2
                      + (bf.size + bp1.size + bp2.size + bp3.size + cond_slab.size) * 4
                      + Bp * 128 * 4)

    kernel = functools.partial(_gin_fused_kernel, num_graphs)

    return pl.pallas_call(
        kernel,
        out_shape=jax.ShapeDtypeStruct((Bp, 128), jnp.float32),
        grid_spec=pltpu.PrefetchScalarGridSpec(
            num_scalar_prefetch=1,                 # last_idx -> SMEM
            grid=(L,),
            in_specs=[
                resident(),                                           # Adj (bf16)
                resident(),                                           # h0 (f32)
                pl.BlockSpec((1, Np, Dp), lambda l, last: (l, 0, 0)),  # eaggr_l (bf16)
                pl.BlockSpec((1, Dp, Hp), lambda l, last: (l, 0, 0)),  # W1_l (bf16)
                pl.BlockSpec((1, 1, Hp), lambda l, last: (l, 0, 0)),   # b1_l (f32)
                pl.BlockSpec((1, Hp, Dp), lambda l, last: (l, 0, 0)),  # W2_l (bf16, BN folded)
                pl.BlockSpec((1, 1, Dp), lambda l, last: (l, 0, 0)),   # b2_l (f32, BN folded)
                resident(), resident(), resident(),                   # wf, bf, cond_slab
                resident(), resident(),                               # wp1, bp1
                resident(), resident(),                               # wp2, bp2
                resident(), resident(),                               # wp3, bp3
            ],
            out_specs=resident(),
            scratch_shapes=[pltpu.VMEM((Np, Dp), jnp.float32)],
        ),
        compiler_params=pltpu.CompilerParams(
            dimension_semantics=("arbitrary",),        # layer axis is sequential
            vmem_limit_bytes=48 * 1024 * 1024),        # safe on v7x (64 MiB), > default on v6e
        cost_estimate=pl.CostEstimate(flops=flops, transcendentals=transcendentals,
                                      bytes_accessed=bytes_accessed),
    )(last_idx, adj, h0, eaggrs, w1s, b1s, w2s, b2s,
      wf, bf, cond_slab, wp1, bp1, wp2, bp2, wp3, bp3)


# -------------------- parameter init (deterministic, synthetic) --------------------
def xavier_uniform(key, shape):
    fan_in, fan_out = shape
    limit = (6.0 / (fan_in + fan_out)) ** 0.5
    return jax.random.uniform(key, shape, jnp.float32, -limit, limit)


def linear_init(key, fan_in, fan_out):
    kw, kb = jax.random.split(key)
    bound = 1.0 / (fan_in ** 0.5)
    W = jax.random.uniform(kw, (fan_in, fan_out), jnp.float32, -bound, bound)
    b = jax.random.uniform(kb, (1, fan_out), jnp.float32, -bound, bound)
    return W, b


def make_params(key, num_layer, emb_dim, feat_dim):
    keys = iter(jax.random.split(key, 64))
    p = {}
    p['x_emb'] = [xavier_uniform(next(keys), (n, emb_dim))
                  for n in (num_atom_type, num_Hbrid, num_Aro, num_degree, num_charge)]
    p['layers'] = []
    for _ in range(num_layer):
        lp = {}
        lp['edge_emb'] = [xavier_uniform(next(keys), (n, emb_dim))
                          for n in (num_bond_type, num_bond_isInRing, num_bond_isAromatic)]
        lp['w1'], lp['b1'] = linear_init(next(keys), emb_dim, 2 * emb_dim)
        lp['w2'], lp['b2'] = linear_init(next(keys), 2 * emb_dim, emb_dim)
        # BatchNorm1d (eval mode): gamma=1, beta=0, running_mean=0, running_var=1
        lp['bn_gamma'] = jnp.ones((1, emb_dim), jnp.float32)
        lp['bn_beta'] = jnp.zeros((1, emb_dim), jnp.float32)
        lp['bn_mean'] = jnp.zeros((1, emb_dim), jnp.float32)
        lp['bn_var'] = jnp.ones((1, emb_dim), jnp.float32)
        p['layers'].append(lp)
    p['wf'], p['bf'] = linear_init(next(keys), emb_dim, feat_dim)
    p['wp1'], p['bp1'] = linear_init(next(keys), feat_dim + 2, feat_dim)
    p['wp2'], p['bp2'] = linear_init(next(keys), feat_dim, feat_dim // 2)
    p['wp3'], p['bp3'] = linear_init(next(keys), feat_dim // 2, 1)
    return p


# -------------------- full forward (glue in JAX, hot path in one Pallas call) ----------
def gin_forward(params, node_x, edge_index, edge_attr, batch, cond, num_graphs):
    N = node_x.shape[0]
    emb_dim = params['x_emb'][0].shape[1]
    feat_dim = params['wf'].shape[1]

    Dp = _rup(emb_dim, 128)            # 128-lane padded feature dims
    Hp = _rup(2 * emb_dim, 128)
    Np = _rup(N, 128)                  # node rows padded (lane-dense adj columns)

    # node embedding: sum of 5 table lookups (glue: data-dependent gather)
    h0 = jnp.zeros((N, emb_dim), jnp.float32)
    for c, tbl in enumerate(params['x_emb']):
        h0 = h0 + jnp.take(tbl, node_x[:, c], axis=0)
    h0p = _pad2(h0, (Np, Dp))

    # add self loops once (same for every layer)
    self_loops = jnp.arange(N, dtype=edge_index.dtype)
    ei = jnp.concatenate([edge_index, jnp.stack([self_loops, self_loops])], axis=1)
    self_loop_attr = jnp.broadcast_to(
        jnp.array([[num_bond_type - 1, num_bond_isInRing - 1, num_bond_isAromatic - 1]],
                  dtype=edge_attr.dtype), (N, 3))
    ea = jnp.concatenate([edge_attr, self_loop_attr], axis=0)
    src, dst = ei[0], ei[1]

    # Adjacency with edge multiplicity: Adj[i, j] = #edges j -> i (incl. self loops).
    # Small integer counts are exact in bf16.
    adj = jnp.zeros((Np, Np), jnp.float32).at[dst, src].add(1.0).astype(jnp.bfloat16)

    # per-layer edge-embedding aggregation (independent of h) + folded/padded weights
    eps = 1e-5
    eaggrs, w1s, b1s, w2s, b2s = [], [], [], [], []
    for lp in params['layers']:
        eemb = (jnp.take(lp['edge_emb'][0], ea[:, 0], axis=0)
                + jnp.take(lp['edge_emb'][1], ea[:, 1], axis=0)
                + jnp.take(lp['edge_emb'][2], ea[:, 2], axis=0))
        eaggr = jnp.zeros((Np, emb_dim), jnp.float32).at[dst].add(eemb)  # scatter by target
        eaggrs.append(_pad2(eaggr, (Np, Dp)).astype(jnp.bfloat16))       # bf16 stream
        w1s.append(_pad2(lp['w1'], (Dp, Hp)).astype(jnp.bfloat16))
        b1s.append(_pad2(lp['b1'], (1, Hp)))
        # general BatchNorm (eval) fold into the second linear
        scale = lp['bn_gamma'] / jnp.sqrt(lp['bn_var'] + eps)
        w2f = lp['w2'] * scale
        b2f = (lp['b2'] - lp['bn_mean']) * scale + lp['bn_beta']
        w2s.append(_pad2(w2f, (Hp, Dp)).astype(jnp.bfloat16))
        b2s.append(_pad2(b2f, (1, Dp)))
    eaggrs = jnp.stack(eaggrs)
    w1s, b1s = jnp.stack(w1s), jnp.stack(b1s)
    w2s, b2s = jnp.stack(w2s), jnp.stack(b2s)

    # extract(): last node index of each graph (scalar-prefetched into SMEM)
    B = int(num_graphs)                                   # static
    Bp = max(_rup(B, 8), 8)
    counts = jnp.bincount(batch, length=B)
    last_idx = (jnp.cumsum(counts) - 1).astype(jnp.int32)  # (B,)

    # padded readout parameters (zero padding keeps padded columns inert)
    Fin = _rup(feat_dim + 2, 128)          # head input width (feat || cond)
    F1 = _rup(feat_dim, 128)
    F2 = _rup(feat_dim // 2, 128)
    wf_p = _pad2(params['wf'], (Dp, Fin)).astype(jnp.bfloat16)
    bf_p = _pad2(params['bf'], (1, Fin))
    cond_slab = jnp.zeros((Bp, Fin), jnp.float32).at[:B, feat_dim:feat_dim + 2].set(cond)
    wp1_p = _pad2(params['wp1'], (Fin, F1)).astype(jnp.bfloat16)
    bp1_p = _pad2(params['bp1'], (1, F1))
    wp2_p = _pad2(params['wp2'], (F1, F2)).astype(jnp.bfloat16)
    bp2_p = _pad2(params['bp2'], (1, F2))
    wp3_p = _pad2(params['wp3'], (F2, 128)).astype(jnp.bfloat16)
    bp3_p = _pad2(params['bp3'], (1, 128))

    out = gin_fused(last_idx, adj, h0p, eaggrs, w1s, b1s, w2s, b2s,
                    wf_p, bf_p, cond_slab, wp1_p, bp1_p, wp2_p, bp2_p, wp3_p, bp3_p,
                    num_graphs=B)                          # (Bp, 128)
    return out[:B, :1]


if __name__ == "__main__":
    args = dict(num_gin_layer=2, emb_dim=32, feat_dim=32, drop_ratio=0.0, pool='mean')

    key = jax.random.PRNGKey(0)
    k_p, k_x1, k_x2, k_x3, k_x4, k_x5, k_e1, k_e2, k_e3, k_ei, k_c = jax.random.split(key, 11)

    params = make_params(k_p, args['num_gin_layer'], args['emb_dim'], args['feat_dim'])

    # synthetic graph batch: graph0 has 5 nodes, graph1 has 7 nodes -> N=12; E=16 directed edges
    N, E, B = 12, 16, 2
    node_x = jnp.stack([
        jax.random.randint(k_x1, (N,), 0, num_atom_type),
        jax.random.randint(k_x2, (N,), 0, num_Hbrid),
        jax.random.randint(k_x3, (N,), 0, num_Aro),
        jax.random.randint(k_x4, (N,), 0, num_degree),
        jax.random.randint(k_x5, (N,), 0, num_charge),
    ], axis=1).astype(jnp.int32)                              # (N, 5)

    edge_attr = jnp.stack([
        jax.random.randint(k_e1, (E,), 0, num_bond_type),
        jax.random.randint(k_e2, (E,), 0, num_bond_isInRing),
        jax.random.randint(k_e3, (E,), 0, num_bond_isAromatic),
    ], axis=1).astype(jnp.int32)                              # (E, 3)

    # edges: first 8 within graph0 (nodes 0..4), last 8 within graph1 (nodes 5..11)
    ks, kd = jax.random.split(k_ei)
    src0 = jax.random.randint(ks, (8,), 0, 5)
    dst0 = jax.random.randint(kd, (8,), 0, 5)
    src1 = jax.random.randint(ks, (8,), 5, 12)
    dst1 = jax.random.randint(kd, (8,), 5, 12)
    edge_index = jnp.stack([jnp.concatenate([src0, src1]),
                            jnp.concatenate([dst0, dst1])]).astype(jnp.int32)  # (2, E)

    batch = jnp.array([0] * 5 + [1] * 7, dtype=jnp.int32)     # (N,)
    cond = jax.random.normal(k_c, (B, 2), jnp.float32)        # (B, 2)

    out = gin_forward(params, node_x, edge_index, edge_attr, batch, cond, num_graphs=B)
    out = jax.block_until_ready(out)
    assert out.shape == (B, 1) and out.dtype == jnp.float32
    print("KERNEL_OK")
</pallas_src>

<mosaic_0001>
module attributes {stable_mosaic.version = 11 : i64} {
  func.func @_gin_fused_kernel(%arg0: i32, %arg1: memref<2xi32, #tpu.memory_space<smem>>, %arg2: memref<128x128xbf16, #tpu.memory_space<vmem>>, %arg3: memref<128x128xf32, #tpu.memory_space<vmem>>, %arg4: memref<1x128x128xbf16, #tpu.memory_space<vmem>>, %arg5: memref<1x128x128xbf16, #tpu.memory_space<vmem>>, %arg6: memref<1x1x128xf32, #tpu.memory_space<vmem>>, %arg7: memref<1x128x128xbf16, #tpu.memory_space<vmem>>, %arg8: memref<1x1x128xf32, #tpu.memory_space<vmem>>, %arg9: memref<128x128xbf16, #tpu.memory_space<vmem>>, %arg10: memref<1x128xf32, #tpu.memory_space<vmem>>, %arg11: memref<8x128xf32, #tpu.memory_space<vmem>>, %arg12: memref<128x128xbf16, #tpu.memory_space<vmem>>, %arg13: memref<1x128xf32, #tpu.memory_space<vmem>>, %arg14: memref<128x128xbf16, #tpu.memory_space<vmem>>, %arg15: memref<1x128xf32, #tpu.memory_space<vmem>>, %arg16: memref<128x128xbf16, #tpu.memory_space<vmem>>, %arg17: memref<1x128xf32, #tpu.memory_space<vmem>>, %arg18: memref<8x128xf32, #tpu.memory_space<vmem>>, %arg19: memref<128x128xf32, #tpu.memory_space<vmem>>) attributes {dimension_semantics = [#tpu.dimension_semantics<arbitrary>], iteration_bounds = array<i64: 2>, scalar_prefetch = 1 : i64, scratch_operands = 1 : i64, tpu.core_type = #tpu.core_type<tc>, window_params = [{pipeline_mode = #tpu.pipeline_mode<synchronous>, transform_indices = @transform_0, window_bounds = array<i64: 128, 128>}, {pipeline_mode = #tpu.pipeline_mode<synchronous>, transform_indices = @transform_1, window_bounds = array<i64: 128, 128>}, {transform_indices = @transform_2, window_bounds = array<i64: 1, 128, 128>}, {transform_indices = @transform_3, window_bounds = array<i64: 1, 128, 128>}, {transform_indices = @transform_4, window_bounds = array<i64: 1, 1, 128>}, {transform_indices = @transform_5, window_bounds = array<i64: 1, 128, 128>}, {transform_indices = @transform_6, window_bounds = array<i64: 1, 1, 128>}, {pipeline_mode = #tpu.pipeline_mode<synchronous>, transform_indices = @transform_7, window_bounds = array<i64: 128, 128>}, {pipeline_mode = #tpu.pipeline_mode<synchronous>, transform_indices = @transform_8, window_bounds = array<i64: 1, 128>}, {pipeline_mode = #tpu.pipeline_mode<synchronous>, transform_indices = @transform_9, window_bounds = array<i64: 8, 128>}, {pipeline_mode = #tpu.pipeline_mode<synchronous>, transform_indices = @transform_10, window_bounds = array<i64: 128, 128>}, {pipeline_mode = #tpu.pipeline_mode<synchronous>, transform_indices = @transform_11, window_bounds = array<i64: 1, 128>}, {pipeline_mode = #tpu.pipeline_mode<synchronous>, transform_indices = @transform_12, window_bounds = array<i64: 128, 128>}, {pipeline_mode = #tpu.pipeline_mode<synchronous>, transform_indices = @transform_13, window_bounds = array<i64: 1, 128>}, {pipeline_mode = #tpu.pipeline_mode<synchronous>, transform_indices = @transform_14, window_bounds = array<i64: 128, 128>}, {pipeline_mode = #tpu.pipeline_mode<synchronous>, transform_indices = @transform_15, window_bounds = array<i64: 1, 128>}, {pipeline_mode = #tpu.pipeline_mode<synchronous>, transform_indices = @transform_16, window_bounds = array<i64: 8, 128>}]} {
    %c0_i32 = arith.constant 0 : i32
    %0 = arith.cmpi eq, %arg0, %c0_i32 : i32
    %1 = arith.extui %0 : i1 to i32
    %c0_i32_0 = arith.constant 0 : i32
    %2 = arith.cmpi ne, %1, %c0_i32_0 : i32
    scf.if %2 {
      %c0_26 = arith.constant 0 : index
      %c0_27 = arith.constant 0 : index
      %37 = vector.load %arg3[%c0_26, %c0_27] : memref<128x128xf32, #tpu.memory_space<vmem>>, vector<128x128xf32>
      %c0_28 = arith.constant 0 : index
      %c0_29 = arith.constant 0 : index
      %38 = vector.load %arg19[%c0_28, %c0_29] : memref<128x128xf32, #tpu.memory_space<vmem>>, vector<128x128xf32>
      tpu.vector_store %arg19[%c0_28, %c0_29], %37 {strides = array<i32>} : memref<128x128xf32, #tpu.memory_space<vmem>>, vector<128x128xf32>,
    } else {
    }
    %c0 = arith.constant 0 : index
    %c0_1 = arith.constant 0 : index
    %3 = vector.load %arg19[%c0, %c0_1] : memref<128x128xf32, #tpu.memory_space<vmem>>, vector<128x128xf32>
    %c0_2 = arith.constant 0 : index
    %c0_3 = arith.constant 0 : index
    %4 = vector.load %arg2[%c0_2, %c0_3] : memref<128x128xbf16, #tpu.memory_space<vmem>>, vector<128x128xbf16>
    %5 = arith.truncf %3 : vector<128x128xf32> to vector<128x128xbf16>
    %cst = arith.constant dense<0.000000e+00> : vector<128x128xf32>
    %6 = tpu.matmul %4, %5, %cst {dimension_numbers = #tpu.dot_dimension_numbers<[1], [0], [0], [1], [0, 0, 1, 1], [], []>} : vector<128x128xbf16>, vector<128x128xbf16>, vector<128x128xf32> -> vector<128x128xf32>
    %c0_4 = arith.constant 0 : index
    %c0_5 = arith.constant 0 : index
    %c0_6 = arith.constant 0 : index
    %7 = vector.load %arg4[%c0_4, %c0_5, %c0_6] : memref<1x128x128xbf16, #tpu.memory_space<vmem>>, vector<1x128x128xbf16>
    %8 = vector.shape_cast %7 : vector<1x128x128xbf16> to vector<128x128xbf16>
    %9 = arith.extf %8 : vector<128x128xbf16> to vector<128x128xf32>
    %10 = arith.addf %6, %9 : vector<128x128xf32>
    %11 = arith.truncf %10 : vector<128x128xf32> to vector<128x128xbf16>
    %c0_7 = arith.constant 0 : index
    %c0_8 = arith.constant 0 : index
    %c0_9 = arith.constant 0 : index
    %12 = vector.load %arg5[%c0_7, %c0_8, %c0_9] : memref<1x128x128xbf16, #tpu.memory_space<vmem>>, vector<1x128x128xbf16>
    %13 = vector.shape_cast %12 : vector<1x128x128xbf16> to vector<128x128xbf16>
    %cst_10 = arith.constant dense<0.000000e+00> : vector<128x128xf32>
    %14 = tpu.matmul %11, %13, %cst_10 {dimension_numbers = #tpu.dot_dimension_numbers<[1], [0], [0], [1], [0, 0, 1, 1], [], []>} : vector<128x128xbf16>, vector<128x128xbf16>, vector<128x128xf32> -> vector<128x128xf32>
    %c0_11 = arith.constant 0 : index
    %c0_12 = arith.constant 0 : index
    %c0_13 = arith.constant 0 : index
    %15 = vector.load %arg6[%c0_11, %c0_12, %c0_13] : memref<1x1x128xf32, #tpu.memory_space<vmem>>, vector<1x1x128xf32>
    %16 = vector.shape_cast %15 : vector<1x1x128xf32> to vector<1x128xf32>
    %17 = vector.broadcast %16 : vector<1x128xf32> to vector<128x128xf32>
    %18 = arith.addf %14, %17 : vector<128x128xf32>
    %cst_14 = arith.constant 0.000000e+00 : f32
    %19 = vector.broadcast %cst_14 : f32 to vector<128x128xf32>
    %20 = arith.maximumf %18, %19 : vector<128x128xf32>
    %21 = arith.truncf %20 : vector<128x128xf32> to vector<128x128xbf16>
    %c0_15 = arith.constant 0 : index
    %c0_16 = arith.constant 0 : index
    %c0_17 = arith.constant 0 : index
    %22 = vector.load %arg7[%c0_15, %c0_16, %c0_17] : memref<1x128x128xbf16, #tpu.memory_space<vmem>>, vector<1x128x128xbf16>
    %23 = vector.shape_cast %22 : vector<1x128x128xbf16> to vector<128x128xbf16>
    %cst_18 = arith.constant dense<0.000000e+00> : vector<128x128xf32>
    %24 = tpu.matmul %21, %23, %cst_18 {dimension_numbers = #tpu.dot_dimension_numbers<[1], [0], [0], [1], [0, 0, 1, 1], [], []>} : vector<128x128xbf16>, vector<128x128xbf16>, vector<128x128xf32> -> vector<128x128xf32>
    %c0_19 = arith.constant 0 : index
    %c0_20 = arith.constant 0 : index
    %c0_21 = arith.constant 0 : index
    %25 = vector.load %arg8[%c0_19, %c0_20, %c0_21] : memref<1x1x128xf32, #tpu.memory_space<vmem>>, vector<1x1x128xf32>
    %26 = vector.shape_cast %25 : vector<1x1x128xf32> to vector<1x128xf32>
    %27 = vector.broadcast %26 : vector<1x128xf32> to vector<128x128xf32>
    %28 = arith.addf %24, %27 : vector<128x128xf32>
    %cst_22 = arith.constant 0.000000e+00 : f32
    %29 = vector.broadcast %cst_22 : f32 to vector<128x128xf32>
    %30 = arith.maximumf %28, %29 : vector<128x128xf32>
    %c1_i32 = arith.constant 1 : i32
    %31 = arith.cmpi slt, %arg0, %c1_i32 : i32
    %32 = arith.extui %31 : i1 to i32
    %c0_i32_23 = arith.constant 0 : i32
    %33 = arith.cmpi ne, %32, %c0_i32_23 : i32
    scf.if %33 {
      %c0_26 = arith.constant 0 : index
      %c0_27 = arith.constant 0 : index
      %37 = vector.load %arg19[%c0_26, %c0_27] : memref<128x128xf32, #tpu.memory_space<vmem>>, vector<128x128xf32>
      tpu.vector_store %arg19[%c0_26, %c0_27], %30 {strides = array<i32>} : memref<128x128xf32, #tpu.memory_space<vmem>>, vector<128x128xf32>,
    } else {
    }
    %c1_i32_24 = arith.constant 1 : i32
    %34 = arith.cmpi eq, %arg0, %c1_i32_24 : i32
    %35 = arith.extui %34 : i1 to i32
    %c0_i32_25 = arith.constant 0 : i32
    %36 = arith.cmpi ne, %35, %c0_i32_25 : i32
    scf.if %36 {
      %37 = tpu.iota {dimensions = array<i32: 0>} : vector<8x128xi32>
      %38 = tpu.iota {dimensions = array<i32: 1>} : vector<8x128xi32>
      %cst_26 = arith.constant 0.000000e+00 : f32
      %39 = vector.broadcast %cst_26 : f32 to vector<8x128xf32>
      %c0_i32_27 = arith.constant 0 : i32
      %40 = vector.broadcast %c0_i32_27 : i32 to vector<8x128xi32>
      %41 = arith.cmpi eq, %37, %40 : vector<8x128xi32>
      %c0_28 = arith.constant 0 : index
      %42 = memref.load %arg1[%c0_28] : memref<2xi32, #tpu.memory_space<smem>>
      %43 = vector.broadcast %42 : i32 to vector<8x128xi32>
      %44 = arith.cmpi eq, %38, %43 : vector<8x128xi32>
      %45 = arith.andi %41, %44 : vector<8x128xi1>
      %cst_29 = arith.constant 1.000000e+00 : f32
      %cst_30 = arith.constant 0.000000e+00 : f32
      %46 = vector.broadcast %cst_29 : f32 to vector<8x128xf32>
      %47 = vector.broadcast %cst_30 : f32 to vector<8x128xf32>
      %48 = arith.select %45, %46, %47 : vector<8x128xi1>, vector<8x128xf32>
      %49 = arith.addf %39, %48 : vector<8x128xf32>
      %c1_i32_31 = arith.constant 1 : i32
      %50 = vector.broadcast %c1_i32_31 : i32 to vector<8x128xi32>
      %51 = arith.cmpi eq, %37, %50 : vector<8x128xi32>
      %c1 = arith.constant 1 : index
      %52 = memref.load %arg1[%c1] : memref<2xi32, #tpu.memory_space<smem>>
      %53 = vector.broadcast %52 : i32 to vector<8x128xi32>
      %54 = arith.cmpi eq, %38, %53 : vector<8x128xi32>
      %55 = arith.andi %51, %54 : vector<8x128xi1>
      %cst_32 = arith.constant 1.000000e+00 : f32
      %cst_33 = arith.constant 0.000000e+00 : f32
      %56 = vector.broadcast %cst_32 : f32 to vector<8x128xf32>
      %57 = vector.broadcast %cst_33 : f32 to vector<8x128xf32>
      %58 = arith.select %55, %56, %57 : vector<8x128xi1>, vector<8x128xf32>
      %59 = arith.addf %49, %58 : vector<8x128xf32>
      %60 = arith.truncf %59 : vector<8x128xf32> to vector<8x128xbf16>
      %61 = arith.truncf %30 : vector<128x128xf32> to vector<128x128xbf16>
      %cst_34 = arith.constant dense<0.000000e+00> : vector<8x128xf32>
      %62 = tpu.matmul %60, %61, %cst_34 {dimension_numbers = #tpu.dot_dimension_numbers<[1], [0], [0], [1], [0, 0, 1, 1], [], []>} : vector<8x128xbf16>, vector<128x128xbf16>, vector<8x128xf32> -> vector<8x128xf32>
      %63 = arith.truncf %62 : vector<8x128xf32> to vector<8x128xbf16>
      %c0_35 = arith.constant 0 : index
      %c0_36 = arith.constant 0 : index
      %64 = vector.load %arg9[%c0_35, %c0_36] : memref<128x128xbf16, #tpu.memory_space<vmem>>, vector<128x128xbf16>
      %cst_37 = arith.constant dense<0.000000e+00> : vector<8x128xf32>
      %65 = tpu.matmul %63, %64, %cst_37 {dimension_numbers = #tpu.dot_dimension_numbers<[1], [0], [0], [1], [0, 0, 1, 1], [], []>} : vector<8x128xbf16>, vector<128x128xbf16>, vector<8x128xf32> -> vector<8x128xf32>
      %c0_38 = arith.constant 0 : index
      %c0_39 = arith.constant 0 : index
      %66 = vector.load %arg10[%c0_38, %c0_39] : memref<1x128xf32, #tpu.memory_space<vmem>>, vector<1x128xf32>
      %67 = vector.broadcast %66 : vector<1x128xf32> to vector<8x128xf32>
      %68 = arith.addf %65, %67 : vector<8x128xf32>
      %c0_40 = arith.constant 0 : index
      %c0_41 = arith.constant 0 : index
      %69 = vector.load %arg11[%c0_40, %c0_41] : memref<8x128xf32, #tpu.memory_space<vmem>>, vector<8x128xf32>
      %70 = arith.addf %68, %69 : vector<8x128xf32>
      %71 = arith.truncf %70 : vector<8x128xf32> to vector<8x128xbf16>
      %c0_42 = arith.constant 0 : index
      %c0_43 = arith.constant 0 : index
      %72 = vector.load %arg12[%c0_42, %c0_43] : memref<128x128xbf16, #tpu.memory_space<vmem>>, vector<128x128xbf16>
      %cst_44 = arith.constant dense<0.000000e+00> : vector<8x128xf32>
      %73 = tpu.matmul %71, %72, %cst_44 {dimension_numbers = #tpu.dot_dimension_numbers<[1], [0], [0], [1], [0, 0, 1, 1], [], []>} : vector<8x128xbf16>, vector<128x128xbf16>, vector<8x128xf32> -> vector<8x128xf32>
      %c0_45 = arith.constant 0 : index
      %c0_46 = arith.constant 0 : index
      %74 = vector.load %arg13[%c0_45, %c0_46] : memref<1x128xf32, #tpu.memory_space<vmem>>, vector<1x128xf32>
      %75 = vector.broadcast %74 : vector<1x128xf32> to vector<8x128xf32>
      %76 = arith.addf %73, %75 : vector<8x128xf32>
      %cst_47 = arith.constant 2.000000e+01 : f32
      %77 = vector.broadcast %cst_47 : f32 to vector<8x128xf32>
      %78 = arith.cmpf ogt, %76, %77 : vector<8x128xf32>
      %cst_48 = arith.constant 2.000000e+01 : f32
      %79 = vector.broadcast %cst_48 : f32 to vector<8x128xf32>
      %80 = arith.minimumf %76, %79 : vector<8x128xf32>
      %81 = math.exp %80 : vector<8x128xf32>
      %82 = math.log1p %81 : vector<8x128xf32>
      %83 = arith.select %78, %76, %82 : vector<8x128xi1>, vector<8x128xf32>
      %84 = arith.truncf %83 : vector<8x128xf32> to vector<8x128xbf16>
      %c0_49 = arith.constant 0 : index
      %c0_50 = arith.constant 0 : index
      %85 = vector.load %arg14[%c0_49, %c0_50] : memref<128x128xbf16, #tpu.memory_space<vmem>>, vector<128x128xbf16>
      %cst_51 = arith.constant dense<0.000000e+00> : vector<8x128xf32>
      %86 = tpu.matmul %84, %85, %cst_51 {dimension_numbers = #tpu.dot_dimension_numbers<[1], [0], [0], [1], [0, 0, 1, 1], [], []>} : vector<8x128xbf16>, vector<128x128xbf16>, vector<8x128xf32> -> vector<8x128xf32>
      %c0_52 = arith.constant 0 : index
      %c0_53 = arith.constant 0 : index
      %87 = vector.load %arg15[%c0_52, %c0_53] : memref<1x128xf32, #tpu.memory_space<vmem>>, vector<1x128xf32>
      %88 = vector.broadcast %87 : vector<1x128xf32> to vector<8x128xf32>
      %89 = arith.addf %86, %88 : vector<8x128xf32>
      %cst_54 = arith.constant 2.000000e+01 : f32
      %90 = vector.broadcast %cst_54 : f32 to vector<8x128xf32>
      %91 = arith.cmpf ogt, %89, %90 : vector<8x128xf32>
      %cst_55 = arith.constant 2.000000e+01 : f32
      %92 = vector.broadcast %cst_55 : f32 to vector<8x128xf32>
      %93 = arith.minimumf %89, %92 : vector<8x128xf32>
      %94 = math.exp %93 : vector<8x128xf32>
      %95 = math.log1p %94 : vector<8x128xf32>
      %96 = arith.select %91, %89, %95 : vector<8x128xi1>, vector<8x128xf32>
      %97 = arith.truncf %96 : vector<8x128xf32> to vector<8x128xbf16>
      %c0_56 = arith.constant 0 : index
      %c0_57 = arith.constant 0 : index
      %98 = vector.load %arg16[%c0_56, %c0_57] : memref<128x128xbf16, #tpu.memory_space<vmem>>, vector<128x128xbf16>
      %cst_58 = arith.constant dense<0.000000e+00> : vector<8x128xf32>
      %99 = tpu.matmul %97, %98, %cst_58 {dimension_numbers = #tpu.dot_dimension_numbers<[1], [0], [0], [1], [0, 0, 1, 1], [], []>} : vector<8x128xbf16>, vector<128x128xbf16>, vector<8x128xf32> -> vector<8x128xf32>
      %c0_59 = arith.constant 0 : index
      %c0_60 = arith.constant 0 : index
      %100 = vector.load %arg17[%c0_59, %c0_60] : memref<1x128xf32, #tpu.memory_space<vmem>>, vector<1x128xf32>
      %101 = vector.broadcast %100 : vector<1x128xf32> to vector<8x128xf32>
      %102 = arith.addf %99, %101 : vector<8x128xf32>
      %c0_61 = arith.constant 0 : index
      %c0_62 = arith.constant 0 : index
      %103 = vector.load %arg18[%c0_61, %c0_62] : memref<8x128xf32, #tpu.memory_space<vmem>>, vector<8x128xf32>
      tpu.vector_store %arg18[%c0_61, %c0_62], %102 {strides = array<i32>} : memref<8x128xf32, #tpu.memory_space<vmem>>, vector<8x128xf32>,
    } else {
    }
    return
  }
  func.func @transform_0(%arg0: i32, %arg1: memref<2xi32, #tpu.memory_space<smem>>) -> (i32, i32) {
    %c0_i32 = arith.constant 0 : i32
    %c0_i32_0 = arith.constant 0 : i32
    %c0_i32_1 = arith.constant 0 : i32
    return %c0_i32, %c0_i32_0 : i32, i32
  }
  func.func @transform_1(%arg0: i32, %arg1: memref<2xi32, #tpu.memory_space<smem>>) -> (i32, i32) {
    %c0_i32 = arith.constant 0 : i32
    %c0_i32_0 = arith.constant 0 : i32
    %c0_i32_1 = arith.constant 0 : i32
    return %c0_i32, %c0_i32_0 : i32, i32
  }
  func.func @transform_2(%arg0: i32, %arg1: memref<2xi32, #tpu.memory_space<smem>>) -> (i32, i32, i32) {
    %c0_i32 = arith.constant 0 : i32
    %c0_i32_0 = arith.constant 0 : i32
    %c0_i32_1 = arith.constant 0 : i32
    return %arg0, %c0_i32, %c0_i32_0 : i32, i32, i32
  }
  func.func @transform_3(%arg0: i32, %arg1: memref<2xi32, #tpu.memory_space<smem>>) -> (i32, i32, i32) {
    %c0_i32 = arith.constant 0 : i32
    %c0_i32_0 = arith.constant 0 : i32
    %c0_i32_1 = arith.constant 0 : i32
    return %arg0, %c0_i32, %c0_i32_0 : i32, i32, i32
  }
  func.func @transform_4(%arg0: i32, %arg1: memref<2xi32, #tpu.memory_space<smem>>) -> (i32, i32, i32) {
    %c0_i32 = arith.constant 0 : i32
    %c0_i32_0 = arith.constant 0 : i32
    %c0_i32_1 = arith.constant 0 : i32
    return %arg0, %c0_i32, %c0_i32_0 : i32, i32, i32
  }
  func.func @transform_5(%arg0: i32, %arg1: memref<2xi32, #tpu.memory_space<smem>>) -> (i32, i32, i32) {
    %c0_i32 = arith.constant 0 : i32
    %c0_i32_0 = arith.constant 0 : i32
    %c0_i32_1 = arith.constant 0 : i32
    return %arg0, %c0_i32, %c0_i32_0 : i32, i32, i32
  }
  func.func @transform_6(%arg0: i32, %arg1: memref<2xi32, #tpu.memory_space<smem>>) -> (i32, i32, i32) {
    %c0_i32 = arith.constant 0 : i32
    %c0_i32_0 = arith.constant 0 : i32
    %c0_i32_1 = arith.constant 0 : i32
    return %arg0, %c0_i32, %c0_i32_0 : i32, i32, i32
  }
  func.func @transform_7(%arg0: i32, %arg1: memref<2xi32, #tpu.memory_space<smem>>) -> (i32, i32) {
    %c0_i32 = arith.constant 0 : i32
    %c0_i32_0 = arith.constant 0 : i32
    %c0_i32_1 = arith.constant 0 : i32
    return %c0_i32, %c0_i32_0 : i32, i32
  }
  func.func @transform_8(%arg0: i32, %arg1: memref<2xi32, #tpu.memory_space<smem>>) -> (i32, i32) {
    %c0_i32 = arith.constant 0 : i32
    %c0_i32_0 = arith.constant 0 : i32
    %c0_i32_1 = arith.constant 0 : i32
    return %c0_i32, %c0_i32_0 : i32, i32
  }
  func.func @transform_9(%arg0: i32, %arg1: memref<2xi32, #tpu.memory_space<smem>>) -> (i32, i32) {
    %c0_i32 = arith.constant 0 : i32
    %c0_i32_0 = arith.constant 0 : i32
    %c0_i32_1 = arith.constant 0 : i32
    return %c0_i32, %c0_i32_0 : i32, i32
  }
  func.func @transform_10(%arg0: i32, %arg1: memref<2xi32, #tpu.memory_space<smem>>) -> (i32, i32) {
    %c0_i32 = arith.constant 0 : i32
    %c0_i32_0 = arith.constant 0 : i32
    %c0_i32_1 = arith.constant 0 : i32
    return %c0_i32, %c0_i32_0 : i32, i32
  }
  func.func @transform_11(%arg0: i32, %arg1: memref<2xi32, #tpu.memory_space<smem>>) -> (i32, i32) {
    %c0_i32 = arith.constant 0 : i32
    %c0_i32_0 = arith.constant 0 : i32
    %c0_i32_1 = arith.constant 0 : i32
    return %c0_i32, %c0_i32_0 : i32, i32
  }
  func.func @transform_12(%arg0: i32, %arg1: memref<2xi32, #tpu.memory_space<smem>>) -> (i32, i32) {
    %c0_i32 = arith.constant 0 : i32
    %c0_i32_0 = arith.constant 0 : i32
    %c0_i32_1 = arith.constant 0 : i32
    return %c0_i32, %c0_i32_0 : i32, i32
  }
  func.func @transform_13(%arg0: i32, %arg1: memref<2xi32, #tpu.memory_space<smem>>) -> (i32, i32) {
    %c0_i32 = arith.constant 0 : i32
    %c0_i32_0 = arith.constant 0 : i32
    %c0_i32_1 = arith.constant 0 : i32
    return %c0_i32, %c0_i32_0 : i32, i32
  }
  func.func @transform_14(%arg0: i32, %arg1: memref<2xi32, #tpu.memory_space<smem>>) -> (i32, i32) {
    %c0_i32 = arith.constant 0 : i32
    %c0_i32_0 = arith.constant 0 : i32
    %c0_i32_1 = arith.constant 0 : i32
    return %c0_i32, %c0_i32_0 : i32, i32
  }
  func.func @transform_15(%arg0: i32, %arg1: memref<2xi32, #tpu.memory_space<smem>>) -> (i32, i32) {
    %c0_i32 = arith.constant 0 : i32
    %c0_i32_0 = arith.constant 0 : i32
    %c0_i32_1 = arith.constant 0 : i32
    return %c0_i32, %c0_i32_0 : i32, i32
  }
  func.func @transform_16(%arg0: i32, %arg1: memref<2xi32, #tpu.memory_space<smem>>) -> (i32, i32) {
    %c0_i32 = arith.constant 0 : i32
    %c0_i32_0 = arith.constant 0 : i32
    %c0_i32_1 = arith.constant 0 : i32
    return %c0_i32, %c0_i32_0 : i32, i32
  }
}

</mosaic_0001>

<llo_original>
// kernel: tpu_custom_call.1
$region0: #{tpu_custom_call.1}
  #allocation0 [shape = 'u32[]', space=smem, size = 0x4, offset = 0x4, fixed_abs, tag = 'smem constant byte address 0x4 - core index']
  #allocation1 [shape = 'u32[144,128]{1,0:T(1,128)}', space=vmem, size = 0x12000, scoped, tag = 'internal scratch']
  #allocation2 [shape = 'f32[128,128]{1,0:T(8,128)}', space=vmem, size = 0x10000, scoped, tag = 'scratch operand']
  #allocation3 [shape = 's32[1]{0}', space=sflag, size = 0x4, scoped, tag = 'scoped memory for tpu_custom_call.1']
  #allocation4 [shape = 'u8[512]{0}', space=smem, size = 0x200, scoped, tag = 'prefetched SMEM operand 0']
  %s0 = inlined_call_operand.hbm [shape: s32[2], index: 0, kind: input, shape index: {}]
  %s1 = inlined_call_operand.hbm [shape: bf16[128,128], index: 1, kind: input, shape index: {}]
  %s2 = inlined_call_operand.hbm [shape: f32[128,128], index: 2, kind: input, shape index: {}]
  %s3 = inlined_call_operand.hbm [shape: bf16[2,128,128], index: 3, kind: input, shape index: {}]
  %s4 = inlined_call_operand.hbm [shape: bf16[2,128,128], index: 4, kind: input, shape index: {}]
  %s5 = inlined_call_operand.vmem [shape: f32[2,1,128], index: 5, kind: input, shape index: {}]
  %s6 = inlined_call_operand.hbm [shape: bf16[2,128,128], index: 6, kind: input, shape index: {}]
  %s7 = inlined_call_operand.vmem [shape: f32[2,1,128], index: 7, kind: input, shape index: {}]
  %s8 = inlined_call_operand.hbm [shape: bf16[128,128], index: 8, kind: input, shape index: {}]
  %s9 = inlined_call_operand.vmem [shape: f32[1,128], index: 9, kind: input, shape index: {}]
  %s10 = inlined_call_operand.vmem [shape: f32[8,128], index: 10, kind: input, shape index: {}]
  %s11 = inlined_call_operand.hbm [shape: bf16[128,128], index: 11, kind: input, shape index: {}]
  %s12 = inlined_call_operand.vmem [shape: f32[1,128], index: 12, kind: input, shape index: {}]
  %s13 = inlined_call_operand.hbm [shape: bf16[128,128], index: 13, kind: input, shape index: {}]
  %s14 = inlined_call_operand.vmem [shape: f32[1,128], index: 14, kind: input, shape index: {}]
  %s15 = inlined_call_operand.hbm [shape: bf16[128,128], index: 15, kind: input, shape index: {}]
  %s16 = inlined_call_operand.vmem [shape: f32[1,128], index: 16, kind: input, shape index: {}]
  %s17 = inlined_call_operand.hbm [shape: f32[8,128], index: 17, kind: output, shape index: {}]
  %s18 = sld [smem:[#allocation0]]
  $region145: #{tpu_custom_call.1} parent=0
    _
  %s20 = ssub.s32 1, %s18
  %s21 = scalar_select 0, %s20, %s18
  %23 = dma.hbm_to_smem %s0, 16, [#allocation4], [#allocation3]
  %24 = dma.done [#allocation3], 16
  %25 = sfence
  $region1: #{tpu_custom_call.1} parent=0
    #allocation5 [shape = 'u8[32768]{0}', space=vmem, size = 0x8000, scoped, tag = 'input window, operand 1, single buffered']
    #allocation6 [shape = 's32[2]{0}', space=sflag, size = 0x8, scoped, tag = 'scoped memory for tpu_custom_call.1']
    #allocation7 [shape = 's32[2]{0}', space=sflag, size = 0x8, scoped, tag = 'scoped memory for tpu_custom_call.1']
    #allocation8 [shape = 'u8[65536]{0}', space=vmem, size = 0x10000, scoped, tag = 'input window, operand 2, single buffered']
    #allocation9 [shape = 's32[1]{0}', space=sflag, size = 0x4, scoped, tag = 'scoped memory for tpu_custom_call.1']
    #allocation10 [shape = 'u8[65536]{0}', space=vmem, size = 0x10000, scoped, tag = 'input window, operand 3']
    #allocation11 [shape = 'u8[65536]{0}', space=vmem, size = 0x10000, scoped, tag = 'input window, operand 4']
    #allocation12 [shape = 'u8[65536]{0}', space=vmem, size = 0x10000, scoped, tag = 'input window, operand 6']
    #allocation13 [shape = 'u8[32768]{0}', space=vmem, size = 0x8000, scoped, tag = 'input window, operand 8, single buffered']
    #allocation14 [shape = 'u8[32768]{0}', space=vmem, size = 0x8000, scoped, tag = 'input window, operand 11, single buffered']
    #allocation15 [shape = 's32[1]{0}', space=sflag, size = 0x4, scoped, tag = 'scoped memory for tpu_custom_call.1']
    #allocation16 [shape = 'u8[32768]{0}', space=vmem, size = 0x8000, scoped, tag = 'input window, operand 13, single buffered']
    #allocation17 [shape = 'u8[32768]{0}', space=vmem, size = 0x8000, scoped, tag = 'input window, operand 15, single buffered']
    #allocation18 [shape = 's32[1]{0}', space=sflag, size = 0x4, scoped, tag = 'scoped memory for tpu_custom_call.1']
    #allocation19 [shape = 'u8[4096]{0}', space=vmem, size = 0x1000, scoped, tag = 'output window, operand 0, single buffered']
    %26 = vsyncpa [#allocation6], 0
    %27 = vsyncpa [#allocation9], 0
    %28 = vsyncpa [#allocation15], 0
    %29 = vsyncpa [#allocation18], 0
    %30 = vsyncpa [#allocation7], 0
    loop: start=0, step=1, limit=4
    $region2: #{tpu_custom_call.1} parent=1 // loop_pre_header
      _
    $region3: #{tpu_custom_call.1} parent=1 // loop_header
      %s32 = sphi 0, %s36
      %p33 = scmp.ge.s32.totalorder %s32, 4
      %s40 = sphi 0, %s40
      %s42 = sphi 0, %s40
      %s43 = sphi 0, %s42
      %s57 = sphi 0, %s43
      %s61 = sphi 0, %s61
      %s63 = sphi 0, %s61
      %s64 = sphi 0, %s63
      %s78 = sphi 0, %s64
      %s84 = sphi 0, %s86
      %s87 = sphi 0, %s84
      %s88 = sphi 0, %s87
      %s104 = sphi 0, %s88
      %s110 = sphi 0, %s112
      %s113 = sphi 0, %s110
      %s114 = sphi 0, %s113
      %s130 = sphi 0, %s114
      %s136 = sphi 0, %s138
      %s139 = sphi 0, %s136
      %s140 = sphi 0, %s139
      %s156 = sphi 0, %s140
      %s162 = sphi 0, %s164
      %s165 = sphi 0, %s162
      %s166 = sphi 0, %s165
      %s182 = sphi 0, %s166
      %s188 = sphi 0, %s190
      %s191 = sphi 0, %s188
      %s192 = sphi 0, %s191
      %s208 = sphi 0, %s192
      %s212 = sphi 0, %s212
      %s214 = sphi 0, %s212
      %s215 = sphi 0, %s214
      %s229 = sphi 0, %s215
      %s233 = sphi 0, %s233
      %s235 = sphi 0, %s233
      %s236 = sphi 0, %s235
      %s250 = sphi 0, %s236
      %s254 = sphi 0, %s254
      %s256 = sphi 0, %s254
      %s257 = sphi 0, %s256
      %s271 = sphi 0, %s257
      %s275 = sphi 0, %s275
      %s277 = sphi 0, %s275
      %s278 = sphi 0, %s277
      %s292 = sphi 0, %s278
      %s296 = sphi 0, %s296
      %s298 = sphi 0, %s296
      %s299 = sphi 0, %s298
      %s313 = sphi 0, %s299
      %s317 = sphi 0, %s317
      %s319 = sphi 0, %s317
      %s320 = sphi 0, %s319
      %s334 = sphi 0, %s320
      %s338 = sphi 0, %s338
      %s340 = sphi 0, %s338
      %s341 = sphi 0, %s340
      %s355 = sphi 0, %s341
      %s359 = sphi 0, %s359
      %s361 = sphi 0, %s359
      %s362 = sphi 0, %s361
      %s376 = sphi 0, %s362
      %s380 = sphi 0, %s380
      %s382 = sphi 0, %s380
      %s383 = sphi 0, %s382
      %s397 = sphi 0, %s383
      %s401 = sphi 0, %s401
      %s403 = sphi 0, %s401
      %s404 = sphi 0, %s403
      %s418 = sphi 0, %s404
    $region4: #{tpu_custom_call.1} parent=1 // loop_header_branch
      %35 = sbr.rel (%p33) target = $region8
    $region5: #{tpu_custom_call.1} parent=1 // loop_body
      %s37 = ssub.s32 %s32, 1
      %s38 = ssub.s32 %s32, 2
      %s39 = sadd.s32 %s32, 1
      %s41 = sadd.s32 %s40, 1
      %p44 = scmp.eq.s32.totalorder %s32, 1
      %p45 = scmp.ne.s32.totalorder %s40, %s42
      %p46 = scmp.eq.s32.totalorder %s32, 0
      %p47 = por %p45, %p46
      %p48 = scmp.ne.s32.totalorder %s40, %s42
      %p49 = scmp.eq.s32.totalorder %s37, 1
      %p50 = por %p48, %p49
      %p51 = scmp.ne.s32.totalorder %s42, %s43
      %p52 = scmp.eq.s32.totalorder %s37, 0
      %p53 = por %p51, %p52
      %p54 = scmp.ne.s32.totalorder %s42, %s43
      %p55 = scmp.eq.s32.totalorder %s38, 1
      %p56 = por %p54, %p55
      %p58 = scmp.ne.s32.totalorder %s43, %s57
      %p59 = scmp.eq.s32.totalorder %s38, 0
      %p60 = por %p58, %p59
      %s62 = sadd.s32 %s61, 1
      %p65 = scmp.eq.s32.totalorder %s32, 1
      %p66 = scmp.ne.s32.totalorder %s61, %s63
      %p67 = scmp.eq.s32.totalorder %s32, 0
      %p68 = por %p66, %p67
      %p69 = scmp.ne.s32.totalorder %s61, %s63
      %p70 = scmp.eq.s32.totalorder %s37, 1
      %p71 = por %p69, %p70
      %p72 = scmp.ne.s32.totalorder %s63, %s64
      %p73 = scmp.eq.s32.totalorder %s37, 0
      %p74 = por %p72, %p73
      %p75 = scmp.ne.s32.totalorder %s63, %s64
      %p76 = scmp.eq.s32.totalorder %s38, 1
      %p77 = por %p75, %p76
      %p79 = scmp.ne.s32.totalorder %s64, %s78
      %p80 = scmp.eq.s32.totalorder %s38, 0
      %p81 = por %p79, %p80
      %s82 = ssub.s32 %s32, %s39
      %p83 = scmp.eq.s32.totalorder %s82, 0
      %s85 = sadd.s32 %s84, 1
      %s86 = scalar_select %p83, %s84, %s85
      %p89 = pneg %p83
      %p90 = scmp.eq.s32.totalorder %s32, 1
      %p91 = por %p89, %p90
      %p92 = scmp.ne.s32.totalorder %s84, %s87
      %p93 = scmp.eq.s32.totalorder %s32, 0
      %p94 = por %p92, %p93
      %p95 = scmp.ne.s32.totalorder %s84, %s87
      %p96 = scmp.eq.s32.totalorder %s37, 1
      %p97 = por %p95, %p96
      %p98 = scmp.ne.s32.totalorder %s87, %s88
      %p99 = scmp.eq.s32.totalorder %s37, 0
      %p100 = por %p98, %p99
      %p101 = scmp.ne.s32.totalorder %s87, %s88
      %p102 = scmp.eq.s32.totalorder %s38, 1
      %p103 = por %p101, %p102
      %p105 = scmp.ne.s32.totalorder %s88, %s104
      %p106 = scmp.eq.s32.totalorder %s38, 0
      %p107 = por %p105, %p106
      %s108 = ssub.s32 %s32, %s39
      %p109 = scmp.eq.s32.totalorder %s108, 0
      %s111 = sadd.s32 %s110, 1
      %s112 = scalar_select %p109, %s110, %s111
      %p115 = pneg %p109
      %p116 = scmp.eq.s32.totalorder %s32, 1
      %p117 = por %p115, %p116
      %p118 = scmp.ne.s32.totalorder %s110, %s113
      %p119 = scmp.eq.s32.totalorder %s32, 0
      %p120 = por %p118, %p119
      %p121 = scmp.ne.s32.totalorder %s110, %s113
      %p122 = scmp.eq.s32.totalorder %s37, 1
      %p123 = por %p121, %p122
      %p124 = scmp.ne.s32.totalorder %s113, %s114
      %p125 = scmp.eq.s32.totalorder %s37, 0
      %p126 = por %p124, %p125
      %p127 = scmp.ne.s32.totalorder %s113, %s114
      %p128 = scmp.eq.s32.totalorder %s38, 1
      %p129 = por %p127, %p128
      %p131 = scmp.ne.s32.totalorder %s114, %s130
      %p132 = scmp.eq.s32.totalorder %s38, 0
      %p133 = por %p131, %p132
      %s134 = ssub.s32 %s32, %s39
      %p135 = scmp.eq.s32.totalorder %s134, 0
      %s137 = sadd.s32 %s136, 1
      %s138 = scalar_select %p135, %s136, %s137
      %p141 = pneg %p135
      %p142 = scmp.eq.s32.totalorder %s32, 1
      %p143 = por %p141, %p142
      %p144 = scmp.ne.s32.totalorder %s136, %s139
      %p145 = scmp.eq.s32.totalorder %s32, 0
      %p146 = por %p144, %p145
      %p147 = scmp.ne.s32.totalorder %s136, %s139
      %p148 = scmp.eq.s32.totalorder %s37, 1
      %p149 = por %p147, %p148
      %p150 = scmp.ne.s32.totalorder %s139, %s140
      %p151 = scmp.eq.s32.totalorder %s37, 0
      %p152 = por %p150, %p151
      %p153 = scmp.ne.s32.totalorder %s139, %s140
      %p154 = scmp.eq.s32.totalorder %s38, 1
      %p155 = por %p153, %p154
      %p157 = scmp.ne.s32.totalorder %s140, %s156
      %p158 = scmp.eq.s32.totalorder %s38, 0
      %p159 = por %p157, %p158
      %s160 = ssub.s32 %s32, %s39
      %p161 = scmp.eq.s32.totalorder %s160, 0
      %s163 = sadd.s32 %s162, 1
      %s164 = scalar_select %p161, %s162, %s163
      %p167 = pneg %p161
      %p168 = scmp.eq.s32.totalorder %s32, 1
      %p169 = por %p167, %p168
      %p170 = scmp.ne.s32.totalorder %s162, %s165
      %p171 = scmp.eq.s32.totalorder %s32, 0
      %p172 = por %p170, %p171
      %p173 = scmp.ne.s32.totalorder %s162, %s165
      %p174 = scmp.eq.s32.totalorder %s37, 1
      %p175 = por %p173, %p174
      %p176 = scmp.ne.s32.totalorder %s165, %s166
      %p177 = scmp.eq.s32.totalorder %s37, 0
      %p178 = por %p176, %p177
      %p179 = scmp.ne.s32.totalorder %s165, %s166
      %p180 = scmp.eq.s32.totalorder %s38, 1
      %p181 = por %p179, %p180
      %p183 = scmp.ne.s32.totalorder %s166, %s182
      %p184 = scmp.eq.s32.totalorder %s38, 0
      %p185 = por %p183, %p184
      %s186 = ssub.s32 %s32, %s39
      %p187 = scmp.eq.s32.totalorder %s186, 0
      %s189 = sadd.s32 %s188, 1
      %s190 = scalar_select %p187, %s188, %s189
      %p193 = pneg %p187
      %p194 = scmp.eq.s32.totalorder %s32, 1
      %p195 = por %p193, %p194
      %p196 = scmp.ne.s32.totalorder %s188, %s191
      %p197 = scmp.eq.s32.totalorder %s32, 0
      %p198 = por %p196, %p197
      %p199 = scmp.ne.s32.totalorder %s188, %s191
      %p200 = scmp.eq.s32.totalorder %s37, 1
      %p201 = por %p199, %p200
      %p202 = scmp.ne.s32.totalorder %s191, %s192
      %p203 = scmp.eq.s32.totalorder %s37, 0
      %p204 = por %p202, %p203
      %p205 = scmp.ne.s32.totalorder %s191, %s192
      %p206 = scmp.eq.s32.totalorder %s38, 1
      %p207 = por %p205, %p206
      %p209 = scmp.ne.s32.totalorder %s192, %s208
      %p210 = scmp.eq.s32.totalorder %s38, 0
      %p211 = por %p209, %p210
      %s213 = sadd.s32 %s212, 1
      %p216 = scmp.eq.s32.totalorder %s32, 1
      %p217 = scmp.ne.s32.totalorder %s212, %s214
      %p218 = scmp.eq.s32.totalorder %s32, 0
      %p219 = por %p217, %p218
      %p220 = scmp.ne.s32.totalorder %s212, %s214
      %p221 = scmp.eq.s32.totalorder %s37, 1
      %p222 = por %p220, %p221
      %p223 = scmp.ne.s32.totalorder %s214, %s215
      %p224 = scmp.eq.s32.totalorder %s37, 0
      %p225 = por %p223, %p224
      %p226 = scmp.ne.s32.totalorder %s214, %s215
      %p227 = scmp.eq.s32.totalorder %s38, 1
      %p228 = por %p226, %p227
      %p230 = scmp.ne.s32.totalorder %s215, %s229
      %p231 = scmp.eq.s32.totalorder %s38, 0
      %p232 = por %p230, %p231
      %s234 = sadd.s32 %s233, 1
      %p237 = scmp.eq.s32.totalorder %s32, 1
      %p238 = scmp.ne.s32.totalorder %s233, %s235
      %p239 = scmp.eq.s32.totalorder %s32, 0
      %p240 = por %p238, %p239
      %p241 = scmp.ne.s32.totalorder %s233, %s235
      %p242 = scmp.eq.s32.totalorder %s37, 1
      %p243 = por %p241, %p242
      %p244 = scmp.ne.s32.totalorder %s235, %s236
      %p245 = scmp.eq.s32.totalorder %s37, 0
      %p246 = por %p244, %p245
      %p247 = scmp.ne.s32.totalorder %s235, %s236
      %p248 = scmp.eq.s32.totalorder %s38, 1
      %p249 = por %p247, %p248
      %p251 = scmp.ne.s32.totalorder %s236, %s250
      %p252 = scmp.eq.s32.totalorder %s38, 0
      %p253 = por %p251, %p252
      %s255 = sadd.s32 %s254, 1
      %p258 = scmp.eq.s32.totalorder %s32, 1
      %p259 = scmp.ne.s32.totalorder %s254, %s256
      %p260 = scmp.eq.s32.totalorder %s32, 0
      %p261 = por %p259, %p260
      %p262 = scmp.ne.s32.totalorder %s254, %s256
      %p263 = scmp.eq.s32.totalorder %s37, 1
      %p264 = por %p262, %p263
      %p265 = scmp.ne.s32.totalorder %s256, %s257
      %p266 = scmp.eq.s32.totalorder %s37, 0
      %p267 = por %p265, %p266
      %p268 = scmp.ne.s32.totalorder %s256, %s257
      %p269 = scmp.eq.s32.totalorder %s38, 1
      %p270 = por %p268, %p269
      %p272 = scmp.ne.s32.totalorder %s257, %s271
      %p273 = scmp.eq.s32.totalorder %s38, 0
      %p274 = por %p272, %p273
      %s276 = sadd.s32 %s275, 1
      %p279 = scmp.eq.s32.totalorder %s32, 1
      %p280 = scmp.ne.s32.totalorder %s275, %s277
      %p281 = scmp.eq.s32.totalorder %s32, 0
      %p282 = por %p280, %p281
      %p283 = scmp.ne.s32.totalorder %s275, %s277
      %p284 = scmp.eq.s32.totalorder %s37, 1
      %p285 = por %p283, %p284
      %p286 = scmp.ne.s32.totalorder %s277, %s278
      %p287 = scmp.eq.s32.totalorder %s37, 0
      %p288 = por %p286, %p287
      %p289 = scmp.ne.s32.totalorder %s277, %s278
      %p290 = scmp.eq.s32.totalorder %s38, 1
      %p291 = por %p289, %p290
      %p293 = scmp.ne.s32.totalorder %s278, %s292
      %p294 = scmp.eq.s32.totalorder %s38, 0
      %p295 = por %p293, %p294
      %s297 = sadd.s32 %s296, 1
      %p300 = scmp.eq.s32.totalorder %s32, 1
      %p301 = scmp.ne.s32.totalorder %s296, %s298
      %p302 = scmp.eq.s32.totalorder %s32, 0
      %p303 = por %p301, %p302
      %p304 = scmp.ne.s32.totalorder %s296, %s298
      %p305 = scmp.eq.s32.totalorder %s37, 1
      %p306 = por %p304, %p305
      %p307 = scmp.ne.s32.totalorder %s298, %s299
      %p308 = scmp.eq.s32.totalorder %s37, 0
      %p309 = por %p307, %p308
      %p310 = scmp.ne.s32.totalorder %s298, %s299
      %p311 = scmp.eq.s32.totalorder %s38, 1
      %p312 = por %p310, %p311
      %p314 = scmp.ne.s32.totalorder %s299, %s313
      %p315 = scmp.eq.s32.totalorder %s38, 0
      %p316 = por %p314, %p315
      %s318 = sadd.s32 %s317, 1
      %p321 = scmp.eq.s32.totalorder %s32, 1
      %p322 = scmp.ne.s32.totalorder %s317, %s319
      %p323 = scmp.eq.s32.totalorder %s32, 0
      %p324 = por %p322, %p323
      %p325 = scmp.ne.s32.totalorder %s317, %s319
      %p326 = scmp.eq.s32.totalorder %s37, 1
      %p327 = por %p325, %p326
      %p328 = scmp.ne.s32.totalorder %s319, %s320
      %p329 = scmp.eq.s32.totalorder %s37, 0
      %p330 = por %p328, %p329
      %p331 = scmp.ne.s32.totalorder %s319, %s320
      %p332 = scmp.eq.s32.totalorder %s38, 1
      %p333 = por %p331, %p332
      %p335 = scmp.ne.s32.totalorder %s320, %s334
      %p336 = scmp.eq.s32.totalorder %s38, 0
      %p337 = por %p335, %p336
      %s339 = sadd.s32 %s338, 1
      %p342 = scmp.eq.s32.totalorder %s32, 1
      %p343 = scmp.ne.s32.totalorder %s338, %s340
      %p344 = scmp.eq.s32.totalorder %s32, 0
      %p345 = por %p343, %p344
      %p346 = scmp.ne.s32.totalorder %s338, %s340
      %p347 = scmp.eq.s32.totalorder %s37, 1
      %p348 = por %p346, %p347
      %p349 = scmp.ne.s32.totalorder %s340, %s341
      %p350 = scmp.eq.s32.totalorder %s37, 0
      %p351 = por %p349, %p350
      %p352 = scmp.ne.s32.totalorder %s340, %s341
      %p353 = scmp.eq.s32.totalorder %s38, 1
      %p354 = por %p352, %p353
      %p356 = scmp.ne.s32.totalorder %s341, %s355
      %p357 = scmp.eq.s32.totalorder %s38, 0
      %p358 = por %p356, %p357
      %s360 = sadd.s32 %s359, 1
      %p363 = scmp.eq.s32.totalorder %s32, 1
      %p364 = scmp.ne.s32.totalorder %s359, %s361
      %p365 = scmp.eq.s32.totalorder %s32, 0
      %p366 = por %p364, %p365
      %p367 = scmp.ne.s32.totalorder %s359, %s361
      %p368 = scmp.eq.s32.totalorder %s37, 1
      %p369 = por %p367, %p368
      %p370 = scmp.ne.s32.totalorder %s361, %s362
      %p371 = scmp.eq.s32.totalorder %s37, 0
      %p372 = por %p370, %p371
      %p373 = scmp.ne.s32.totalorder %s361, %s362
      %p374 = scmp.eq.s32.totalorder %s38, 1
      %p375 = por %p373, %p374
      %p377 = scmp.ne.s32.totalorder %s362, %s376
      %p378 = scmp.eq.s32.totalorder %s38, 0
      %p379 = por %p377, %p378
      %s381 = sadd.s32 %s380, 1
      %p384 = scmp.eq.s32.totalorder %s32, 1
      %p385 = scmp.ne.s32.totalorder %s380, %s382
      %p386 = scmp.eq.s32.totalorder %s32, 0
      %p387 = por %p385, %p386
      %p388 = scmp.ne.s32.totalorder %s380, %s382
      %p389 = scmp.eq.s32.totalorder %s37, 1
      %p390 = por %p388, %p389
      %p391 = scmp.ne.s32.totalorder %s382, %s383
      %p392 = scmp.eq.s32.totalorder %s37, 0
      %p393 = por %p391, %p392
      %p394 = scmp.ne.s32.totalorder %s382, %s383
      %p395 = scmp.eq.s32.totalorder %s38, 1
      %p396 = por %p394, %p395
      %p398 = scmp.ne.s32.totalorder %s383, %s397
      %p399 = scmp.eq.s32.totalorder %s38, 0
      %p400 = por %p398, %p399
      %s402 = sadd.s32 %s401, 1
      %p405 = scmp.eq.s32.totalorder %s32, 1
      %p406 = scmp.ne.s32.totalorder %s401, %s403
      %p407 = scmp.eq.s32.totalorder %s32, 0
      %p408 = por %p406, %p407
      %p409 = scmp.ne.s32.totalorder %s401, %s403
      %p410 = scmp.eq.s32.totalorder %s37, 1
      %p411 = por %p409, %p410
      %p412 = scmp.ne.s32.totalorder %s403, %s404
      %p413 = scmp.eq.s32.totalorder %s37, 0
      %p414 = por %p412, %p413
      %p415 = scmp.ne.s32.totalorder %s403, %s404
      %p416 = scmp.eq.s32.totalorder %s38, 1
      %p417 = por %p415, %p416
      %p419 = scmp.ne.s32.totalorder %s404, %s418
      %p420 = scmp.eq.s32.totalorder %s38, 0
      %p421 = por %p419, %p420
      %p422 = scmp.le.s32.totalorder 1, %s32
      %p423 = scmp.lt.s32.totalorder %s32, 3
      %p424 = pnand %p422, %p423
      %p425 = pneg %p424
      // Predicated region
      $region9: #{tpu_custom_call.1} parent=5 // pred_check
        _
      $region10: #{tpu_custom_call.1} parent=5 // pred_check_branch
        %427 = sbr.rel (%p424) target = $region12
      $region11: #{tpu_custom_call.1} parent=5 // pred_region
        %s428 = ssub.s32 %s32, 1
        // Predicated region
        $region13: #{tpu_custom_call.1} parent=11 // pred_check
          %p429 = pneg %p53
        $region14: #{tpu_custom_call.1} parent=11 // pred_check_branch
          %431 = sbr.rel (%p429) target = $region16
        $region15: #{tpu_custom_call.1} parent=11 // pred_region
          %s433 = ssub.s32 1024, 1024
          %434 = vsyncadd [#allocation6], %s433
          %s435 = sshll.u32 [#allocation5], 4
          %s436 = int_to_ptr.vmem [resolvable:$true] %s435
          %441 = dma.hbm_to_vmem [thread:$0]  %s1, 1024, %s436, [#allocation6], 64, 64, 4
        $region16: #{tpu_custom_call.1} parent=11 // pred_fallthru
          _
        // Predicated region
        $region17: #{tpu_custom_call.1} parent=11 // pred_check
          %p442 = pneg %p74
        $region18: #{tpu_custom_call.1} parent=11 // pred_check_branch
          %444 = sbr.rel (%p442) target = $region20
        $region19: #{tpu_custom_call.1} parent=11 // pred_region
          %s446 = ssub.s32 2048, 2048
          %447 = vsyncadd [#allocation9], %s446
          %s448 = sshll.u32 [#allocation8], 4
          %s449 = int_to_ptr.vmem [resolvable:$true] %s448
          %454 = dma.hbm_to_vmem [thread:$0]  %s2, 2048, %s449, [#allocation9], 128, 128, 8
        $region20: #{tpu_custom_call.1} parent=11 // pred_fallthru
          _
        // Predicated region
        $region21: #{tpu_custom_call.1} parent=11 // pred_check
          %p455 = pneg %p225
        $region22: #{tpu_custom_call.1} parent=11 // pred_check_branch
          %457 = sbr.rel (%p455) target = $region24
        $region23: #{tpu_custom_call.1} parent=11 // pred_region
          %s459 = ssub.s32 1024, 1024
          %460 = vsyncadd [#allocation9], %s459
          %s461 = sshll.u32 [#allocation13], 4
          %s462 = int_to_ptr.vmem [resolvable:$true] %s461
          %467 = dma.hbm_to_vmem [thread:$0]  %s8, 1024, %s462, [#allocation9], 64, 64, 4
        $region24: #{tpu_custom_call.1} parent=11 // pred_fallthru
          _
        // Predicated region
        $region25: #{tpu_custom_call.1} parent=11 // pred_check
          %p468 = pneg %p246
        $region26: #{tpu_custom_call.1} parent=11 // pred_check_branch
          %470 = sbr.rel (%p468) target = $region28
        $region27: #{tpu_custom_call.1} parent=11 // pred_region
          _
        $region28: #{tpu_custom_call.1} parent=11 // pred_fallthru
          _
        // Predicated region
        $region29: #{tpu_custom_call.1} parent=11 // pred_check
          %p471 = pneg %p267
        $region30: #{tpu_custom_call.1} parent=11 // pred_check_branch
          %473 = sbr.rel (%p471) target = $region32
        $region31: #{tpu_custom_call.1} parent=11 // pred_region
          _
        $region32: #{tpu_custom_call.1} parent=11 // pred_fallthru
          _
        // Predicated region
        $region33: #{tpu_custom_call.1} parent=11 // pred_check
          %p474 = pneg %p288
        $region34: #{tpu_custom_call.1} parent=11 // pred_check_branch
          %476 = sbr.rel (%p474) target = $region36
        $region35: #{tpu_custom_call.1} parent=11 // pred_region
          %s478 = ssub.s32 1024, 1024
          %479 = vsyncadd [#allocation15], %s478
          %s480 = sshll.u32 [#allocation14], 4
          %s481 = int_to_ptr.vmem [resolvable:$true] %s480
          %486 = dma.hbm_to_vmem [thread:$0]  %s11, 1024, %s481, [#allocation15], 64, 64, 4
        $region36: #{tpu_custom_call.1} parent=11 // pred_fallthru
          _
        // Predicated region
        $region37: #{tpu_custom_call.1} parent=11 // pred_check
          %p487 = pneg %p309
        $region38: #{tpu_custom_call.1} parent=11 // pred_check_branch
          %489 = sbr.rel (%p487) target = $region40
        $region39: #{tpu_custom_call.1} parent=11 // pred_region
          _
        $region40: #{tpu_custom_call.1} parent=11 // pred_fallthru
          _
        // Predicated region
        $region41: #{tpu_custom_call.1} parent=11 // pred_check
          %p490 = pneg %p330
        $region42: #{tpu_custom_call.1} parent=11 // pred_check_branch
          %492 = sbr.rel (%p490) target = $region44
        $region43: #{tpu_custom_call.1} parent=11 // pred_region
          %s494 = ssub.s32 1024, 1024
          %495 = vsyncadd [#allocation15], %s494
          %s496 = sshll.u32 [#allocation16], 4
          %s497 = int_to_ptr.vmem [resolvable:$true] %s496
          %502 = dma.hbm_to_vmem [thread:$0]  %s13, 1024, %s497, [#allocation15], 64, 64, 4
        $region44: #{tpu_custom_call.1} parent=11 // pred_fallthru
          _
        // Predicated region
        $region45: #{tpu_custom_call.1} parent=11 // pred_check
          %p503 = pneg %p351
        $region46: #{tpu_custom_call.1} parent=11 // pred_check_branch
          %505 = sbr.rel (%p503) target = $region48
        $region47: #{tpu_custom_call.1} parent=11 // pred_region
          _
        $region48: #{tpu_custom_call.1} parent=11 // pred_fallthru
          _
        // Predicated region
        $region49: #{tpu_custom_call.1} parent=11 // pred_check
          %p506 = pneg %p372
        $region50: #{tpu_custom_call.1} parent=11 // pred_check_branch
          %508 = sbr.rel (%p506) target = $region52
        $region51: #{tpu_custom_call.1} parent=11 // pred_region
          %s510 = ssub.s32 1024, 1024
          %511 = vsyncadd [#allocation18], %s510
          %s512 = sshll.u32 [#allocation17], 4
          %s513 = int_to_ptr.vmem [resolvable:$true] %s512
          %518 = dma.hbm_to_vmem [thread:$0]  %s15, 1024, %s513, [#allocation18], 64, 64, 4
        $region52: #{tpu_custom_call.1} parent=11 // pred_fallthru
          _
        // Predicated region
        $region53: #{tpu_custom_call.1} parent=11 // pred_check
          %p519 = pneg %p393
        $region54: #{tpu_custom_call.1} parent=11 // pred_check_branch
          %521 = sbr.rel (%p519) target = $region56
        $region55: #{tpu_custom_call.1} parent=11 // pred_region
          _
        $region56: #{tpu_custom_call.1} parent=11 // pred_fallthru
          _
      $region12: #{tpu_custom_call.1} parent=5 // pred_fallthru
        _
      %p522 = scmp.lt.s32.totalorder %s32, 2
      // Predicated region
      $region57: #{tpu_custom_call.1} parent=5 // pred_check
        %p523 = pneg %p522
      $region58: #{tpu_custom_call.1} parent=5 // pred_check_branch
        %525 = sbr.rel (%p523) target = $region60
      $region59: #{tpu_custom_call.1} parent=5 // pred_region
        // Predicated region
        $region61: #{tpu_custom_call.1} parent=59 // pred_check
          %p526 = pneg %p94
        $region62: #{tpu_custom_call.1} parent=59 // pred_check_branch
          %528 = sbr.rel (%p526) target = $region64
        $region63: #{tpu_custom_call.1} parent=59 // pred_region
          %s529 = sand.u32 %s32, 1
          %s530 = scalar_lea.sflag [#allocation6], %s529
          %s531 = sand.u32 %s84, 1
          %s532 = smul.addr %s531, 64
          %s533 = scalar_lea.vmem [#allocation10], %s532
          %s535 = ssub.s32 1024, 1024
          %536 = vsyncadd %s530, %s535
          %s537 = smul.addr %s32, 16
          %s538 = smul.addr %s537, 64
          %s539 = scalar_lea.hbm %s3, %s538
          %s540 = sshll.u32 %s533, 4
          %s541 = int_to_ptr.vmem [resolvable:$true] %s540
          %546 = dma.hbm_to_vmem [thread:$0]  %s539, 1024, %s541, %s530, 64, 64, 4
        $region64: #{tpu_custom_call.1} parent=59 // pred_fallthru
          _
        // Predicated region
        $region65: #{tpu_custom_call.1} parent=59 // pred_check
          %p547 = pneg %p120
        $region66: #{tpu_custom_call.1} parent=59 // pred_check_branch
          %549 = sbr.rel (%p547) target = $region68
        $region67: #{tpu_custom_call.1} parent=59 // pred_region
          %s550 = sand.u32 %s32, 1
          %s551 = scalar_lea.sflag [#allocation6], %s550
          %s552 = sand.u32 %s110, 1
          %s553 = smul.addr %s552, 64
          %s554 = scalar_lea.vmem [#allocation11], %s553
          %s556 = ssub.s32 1024, 1024
          %557 = vsyncadd %s551, %s556
          %s558 = smul.addr %s32, 16
          %s559 = smul.addr %s558, 64
          %s560 = scalar_lea.hbm %s4, %s559
          %s561 = sshll.u32 %s554, 4
          %s562 = int_to_ptr.vmem [resolvable:$true] %s561
          %567 = dma.hbm_to_vmem [thread:$0]  %s560, 1024, %s562, %s551, 64, 64, 4
        $region68: #{tpu_custom_call.1} parent=59 // pred_fallthru
          _
        // Predicated region
        $region69: #{tpu_custom_call.1} parent=59 // pred_check
          %p568 = pneg %p146
        $region70: #{tpu_custom_call.1} parent=59 // pred_check_branch
          %570 = sbr.rel (%p568) target = $region72
        $region71: #{tpu_custom_call.1} parent=59 // pred_region
          %p571 = scmp.lt.s32.totalorder %s32, 1
          %s572 = scalar_select %p571, %s32, 1
          %s573 = scalar_lea.vmem %s5, %s572
        $region72: #{tpu_custom_call.1} parent=59 // pred_fallthru
          _
        // Predicated region
        $region73: #{tpu_custom_call.1} parent=59 // pred_check
          %p574 = pneg %p172
        $region74: #{tpu_custom_call.1} parent=59 // pred_check_branch
          %576 = sbr.rel (%p574) target = $region76
        $region75: #{tpu_custom_call.1} parent=59 // pred_region
          %s577 = sand.u32 %s32, 1
          %s578 = scalar_lea.sflag [#allocation6], %s577
          %s579 = sand.u32 %s162, 1
          %s580 = smul.addr %s579, 64
          %s581 = scalar_lea.vmem [#allocation12], %s580
          %s583 = ssub.s32 1024, 1024
          %584 = vsyncadd %s578, %s583
          %s585 = smul.addr %s32, 16
          %s586 = smul.addr %s585, 64
          %s587 = scalar_lea.hbm %s6, %s586
          %s588 = sshll.u32 %s581, 4
          %s589 = int_to_ptr.vmem [resolvable:$true] %s588
          %594 = dma.hbm_to_vmem [thread:$0]  %s587, 1024, %s589, %s578, 64, 64, 4
        $region76: #{tpu_custom_call.1} parent=59 // pred_fallthru
          _
        // Predicated region
        $region77: #{tpu_custom_call.1} parent=59 // pred_check
          %p595 = pneg %p198
        $region78: #{tpu_custom_call.1} parent=59 // pred_check_branch
          %597 = sbr.rel (%p595) target = $region80
        $region79: #{tpu_custom_call.1} parent=59 // pred_region
          %p598 = scmp.lt.s32.totalorder %s32, 1
          %s599 = scalar_select %p598, %s32, 1
          %s600 = scalar_lea.vmem %s7, %s599
        $region80: #{tpu_custom_call.1} parent=59 // pred_fallthru
          _
      $region60: #{tpu_custom_call.1} parent=5 // pred_fallthru
        _
      %p601 = scmp.le.s32.totalorder 1, %s32
      %p602 = scmp.lt.s32.totalorder %s32, 3
      %p603 = pnand %p601, %p602
      %p604 = pneg %p603
      // Predicated region
      $region81: #{tpu_custom_call.1} parent=5 // pred_check
        _
      $region82: #{tpu_custom_call.1} parent=5 // pred_check_branch
        %606 = sbr.rel (%p603) target = $region84
      $region83: #{tpu_custom_call.1} parent=5 // pred_region
        %s607 = ssub.s32 %s32, 1
        // Predicated region
        $region85: #{tpu_custom_call.1} parent=83 // pred_check
          %p608 = pneg %p53
        $region86: #{tpu_custom_call.1} parent=83 // pred_check_branch
          %610 = sbr.rel (%p608) target = $region88
        $region87: #{tpu_custom_call.1} parent=83 // pred_region
          %611 = dma.done [#allocation6], 1024
        $region88: #{tpu_custom_call.1} parent=83 // pred_fallthru
          _
        // Predicated region
        $region89: #{tpu_custom_call.1} parent=83 // pred_check
          %p612 = pneg %p74
        $region90: #{tpu_custom_call.1} parent=83 // pred_check_branch
          %614 = sbr.rel (%p612) target = $region92
        $region91: #{tpu_custom_call.1} parent=83 // pred_region
          %615 = dma.done [#allocation9], 2048
        $region92: #{tpu_custom_call.1} parent=83 // pred_fallthru
          _
        %s616 = sand.u32 %s37, 1
        %s617 = scalar_lea.sflag [#allocation6], %s616
        %s618 = sand.u32 %s87, 1
        %s619 = smul.addr %s618, 64
        %s620 = scalar_lea.vmem [#allocation10], %s619
        // Predicated region
        $region93: #{tpu_custom_call.1} parent=83 // pred_check
          %p621 = pneg %p100
        $region94: #{tpu_custom_call.1} parent=83 // pred_check_branch
          %623 = sbr.rel (%p621) target = $region96
        $region95: #{tpu_custom_call.1} parent=83 // pred_region
          %624 = dma.done %s617, 1024
        $region96: #{tpu_custom_call.1} parent=83 // pred_fallthru
          _
        %s625 = sand.u32 %s37, 1
        %s626 = scalar_lea.sflag [#allocation6], %s625
        %s627 = sand.u32 %s113, 1
        %s628 = smul.addr %s627, 64
        %s629 = scalar_lea.vmem [#allocation11], %s628
        // Predicated region
        $region97: #{tpu_custom_call.1} parent=83 // pred_check
          %p630 = pneg %p126
        $region98: #{tpu_custom_call.1} parent=83 // pred_check_branch
          %632 = sbr.rel (%p630) target = $region100
        $region99: #{tpu_custom_call.1} parent=83 // pred_region
          %633 = dma.done %s626, 1024
        $region100: #{tpu_custom_call.1} parent=83 // pred_fallthru
          _
        %s634 = sand.u32 %s37, 1
        %s635 = scalar_lea.sflag [#allocation6], %s634
        %s636 = sand.u32 %s165, 1
        %s637 = smul.addr %s636, 64
        %s638 = scalar_lea.vmem [#allocation12], %s637
        // Predicated region
        $region101: #{tpu_custom_call.1} parent=83 // pred_check
          %p639 = pneg %p178
        $region102: #{tpu_custom_call.1} parent=83 // pred_check_branch
          %641 = sbr.rel (%p639) target = $region104
        $region103: #{tpu_custom_call.1} parent=83 // pred_region
          %642 = dma.done %s635, 1024
        $region104: #{tpu_custom_call.1} parent=83 // pred_fallthru
          _
        // Predicated region
        $region105: #{tpu_custom_call.1} parent=83 // pred_check
          %p643 = pneg %p225
        $region106: #{tpu_custom_call.1} parent=83 // pred_check_branch
          %645 = sbr.rel (%p643) target = $region108
        $region107: #{tpu_custom_call.1} parent=83 // pred_region
          %646 = dma.done [#allocation9], 1024
        $region108: #{tpu_custom_call.1} parent=83 // pred_fallthru
          _
        // Predicated region
        $region109: #{tpu_custom_call.1} parent=83 // pred_check
          %p647 = pneg %p288
        $region110: #{tpu_custom_call.1} parent=83 // pred_check_branch
          %649 = sbr.rel (%p647) target = $region112
        $region111: #{tpu_custom_call.1} parent=83 // pred_region
          %650 = dma.done [#allocation15], 1024
        $region112: #{tpu_custom_call.1} parent=83 // pred_fallthru
          _
        // Predicated region
        $region113: #{tpu_custom_call.1} parent=83 // pred_check
          %p651 = pneg %p330
        $region114: #{tpu_custom_call.1} parent=83 // pred_check_branch
          %653 = sbr.rel (%p651) target = $region116
        $region115: #{tpu_custom_call.1} parent=83 // pred_region
          %654 = dma.done [#allocation15], 1024
        $region116: #{tpu_custom_call.1} parent=83 // pred_fallthru
          _
        // Predicated region
        $region117: #{tpu_custom_call.1} parent=83 // pred_check
          %p655 = pneg %p372
        $region118: #{tpu_custom_call.1} parent=83 // pred_check_branch
          %657 = sbr.rel (%p655) target = $region120
        $region119: #{tpu_custom_call.1} parent=83 // pred_region
          %658 = dma.done [#allocation18], 1024
        $region120: #{tpu_custom_call.1} parent=83 // pred_fallthru
          _
        %p659 = pneg %p53
        %p660 = pneg %p50
        %p661 = pneg %p74
        %p662 = pneg %p71
        %s663 = sand.u32 %s37, 1
        %s664 = scalar_lea.sflag [#allocation6], %s663
        %s665 = sand.u32 %s87, 1
        %s666 = smul.addr %s665, 64
        %s667 = scalar_lea.vmem [#allocation10], %s666
        %p668 = pneg %p100
        %p669 = pneg %p97
        %s670 = sand.u32 %s37, 1
        %s671 = scalar_lea.sflag [#allocation6], %s670
        %s672 = sand.u32 %s113, 1
        %s673 = smul.addr %s672, 64
        %s674 = scalar_lea.vmem [#allocation11], %s673
        %p675 = pneg %p126
        %p676 = pneg %p123
        %p677 = scmp.lt.s32.totalorder %s37, 1
        %s678 = scalar_select %p677, %s37, 1
        %s679 = scalar_lea.vmem %s5, %s678
        %p680 = pneg %p152
        %p681 = pneg %p149
        %s682 = sand.u32 %s37, 1
        %s683 = scalar_lea.sflag [#allocation6], %s682
        %s684 = sand.u32 %s165, 1
        %s685 = smul.addr %s684, 64
        %s686 = scalar_lea.vmem [#allocation12], %s685
        %p687 = pneg %p178
        %p688 = pneg %p175
        %p689 = scmp.lt.s32.totalorder %s37, 1
        %s690 = scalar_select %p689, %s37, 1
        %s691 = scalar_lea.vmem %s7, %s690
        %p692 = pneg %p204
        %p693 = pneg %p201
        %p694 = pneg %p225
        %p695 = pneg %p222
        %p696 = pneg %p246
        %p697 = pneg %p243
        %p698 = pneg %p267
        %p699 = pneg %p264
        %p700 = pneg %p288
        %p701 = pneg %p285
        %p702 = pneg %p309
        %p703 = pneg %p306
        %p704 = pneg %p330
        %p705 = pneg %p327
        %p706 = pneg %p351
        %p707 = pneg %p348
        %p708 = pneg %p372
        %p709 = pneg %p369
        %p710 = pneg %p393
        %p711 = pneg %p390
        %p712 = pneg %p414
        %p713 = pneg %p411
        %p714 = scmp.lt.s32.totalorder %s37, 1
        %s715 = scalar_select %p714, %s37, 1
        %s716 = scalar_lea.vmem %s5, %s715
        %p717 = scmp.lt.s32.totalorder %s37, 1
        %s718 = scalar_select %p717, %s37, 1
        %s719 = scalar_lea.vmem %s7, %s718
        %p721 = scmp.eq.s32.totalorder %s37, 0
        // Predicated region
        $region121: #{tpu_custom_call.1} parent=83 // pred_check
          %p722 = pneg %p721
        $region122: #{tpu_custom_call.1} parent=83 // pred_check_branch
          %724 = sbr.rel (%p722) target = $region124
        $region123: #{tpu_custom_call.1} parent=83 // pred_region
          %v725 = vld [vmem:[#allocation8] sm:$0xff]
          %v726 = vld [vmem:[#allocation8 + $0x8] sm:$0xff]
          %v727 = vld [vmem:[#allocation8 + $0x10] sm:$0xff]
          %v728 = vld [vmem:[#allocation8 + $0x18] sm:$0xff]
          %v729 = vld [vmem:[#allocation8 + $0x20] sm:$0xff]
          %v730 = vld [vmem:[#allocation8 + $0x28] sm:$0xff]
          %v731 = vld [vmem:[#allocation8 + $0x30] sm:$0xff]
          %v732 = vld [vmem:[#allocation8 + $0x38] sm:$0xff]
          %v733 = vld [vmem:[#allocation8 + $0x40] sm:$0xff]
          %v734 = vld [vmem:[#allocation8 + $0x48] sm:$0xff]
          %v735 = vld [vmem:[#allocation8 + $0x50] sm:$0xff]
          %v736 = vld [vmem:[#allocation8 + $0x58] sm:$0xff]
          %v737 = vld [vmem:[#allocation8 + $0x60] sm:$0xff]
          %v738 = vld [vmem:[#allocation8 + $0x68] sm:$0xff]
          %v739 = vld [vmem:[#allocation8 + $0x70] sm:$0xff]
          %v740 = vld [vmem:[#allocation8 + $0x78] sm:$0xff]
          %741 = vst [vmem:[#allocation2] sm:$0xff] %v725
          %742 = vst [vmem:[#allocation2 + $0x8] sm:$0xff] %v726
          %743 = vst [vmem:[#allocation2 + $0x10] sm:$0xff] %v727
          %744 = vst [vmem:[#allocation2 + $0x18] sm:$0xff] %v728
          %745 = vst [vmem:[#allocation2 + $0x20] sm:$0xff] %v729
          %746 = vst [vmem:[#allocation2 + $0x28] sm:$0xff] %v730
          %747 = vst [vmem:[#allocation2 + $0x30] sm:$0xff] %v731
          %748 = vst [vmem:[#allocation2 + $0x38] sm:$0xff] %v732
          %749 = vst [vmem:[#allocation2 + $0x40] sm:$0xff] %v733
          %750 = vst [vmem:[#allocation2 + $0x48] sm:$0xff] %v734
          %751 = vst [vmem:[#allocation2 + $0x50] sm:$0xff] %v735
          %752 = vst [vmem:[#allocation2 + $0x58] sm:$0xff] %v736
          %753 = vst [vmem:[#allocation2 + $0x60] sm:$0xff] %v737
          %754 = vst [vmem:[#allocation2 + $0x68] sm:$0xff] %v738
          %755 = vst [vmem:[#allocation2 + $0x70] sm:$0xff] %v739
          %756 = vst [vmem:[#allocation2 + $0x78] sm:$0xff] %v740
        $region124: #{tpu_custom_call.1} parent=83 // pred_fallthru
          _
        %v757 = vld [vmem:[#allocation2] sm:$0xff]
        %v758 = vld [vmem:[#allocation2 + $0x8] sm:$0xff]
        %v759 = vld [vmem:[#allocation2 + $0x10] sm:$0xff]
        %v760 = vld [vmem:[#allocation2 + $0x18] sm:$0xff]
        %v761 = vld [vmem:[#allocation2 + $0x20] sm:$0xff]
        %v762 = vld [vmem:[#allocation2 + $0x28] sm:$0xff]
        %v763 = vld [vmem:[#allocation2 + $0x30] sm:$0xff]
        %v764 = vld [vmem:[#allocation2 + $0x38] sm:$0xff]
        %v765 = vld [vmem:[#allocation2 + $0x40] sm:$0xff]
        %v766 = vld [vmem:[#allocation2 + $0x48] sm:$0xff]
        %v767 = vld [vmem:[#allocation2 + $0x50] sm:$0xff]
        %v768 = vld [vmem:[#allocation2 + $0x58] sm:$0xff]
        %v769 = vld [vmem:[#allocation2 + $0x60] sm:$0xff]
        %v770 = vld [vmem:[#allocation2 + $0x68] sm:$0xff]
        %v771 = vld [vmem:[#allocation2 + $0x70] sm:$0xff]
        %v772 = vld [vmem:[#allocation2 + $0x78] sm:$0xff]
        %v773 = vld [vmem:[#allocation5] sm:$0xf]
        %v774 = vld [vmem:[#allocation5 + $0x4] sm:$0xf]
        %v775 = vld [vmem:[#allocation5 + $0x8] sm:$0xf]
        %v776 = vld [vmem:[#allocation5 + $0xc] sm:$0xf]
        %v777 = vld [vmem:[#allocation5 + $0x10] sm:$0xf]
        %v778 = vld [vmem:[#allocation5 + $0x14] sm:$0xf]
        %v779 = vld [vmem:[#allocation5 + $0x18] sm:$0xf]
        %v780 = vld [vmem:[#allocation5 + $0x1c] sm:$0xf]
        %v781 = vld [vmem:[#allocation5 + $0x20] sm:$0xf]
        %v782 = vld [vmem:[#allocation5 + $0x24] sm:$0xf]
        %v783 = vld [vmem:[#allocation5 + $0x28] sm:$0xf]
        %v784 = vld [vmem:[#allocation5 + $0x2c] sm:$0xf]
        %v785 = vld [vmem:[#allocation5 + $0x30] sm:$0xf]
        %v786 = vld [vmem:[#allocation5 + $0x34] sm:$0xf]
        %v787 = vld [vmem:[#allocation5 + $0x38] sm:$0xf]
        %v788 = vld [vmem:[#allocation5 + $0x3c] sm:$0xf]
        %v789 = vpack.c.bf16 %v758, %v757
        %v790 = vpack.c.bf16 %v760, %v759
        %v791 = vpack.c.bf16 %v762, %v761
        %v792 = vpack.c.bf16 %v764, %v763
        %v793 = vpack.c.bf16 %v766, %v765
        %v794 = vpack.c.bf16 %v768, %v767
        %v795 = vpack.c.bf16 %v770, %v769
        %v796 = vpack.c.bf16 %v772, %v771
        %v797 = vld [vmem:[%s620] sm:$0xf]
        %v798 = vld [vmem:[%s620 + $0x4] sm:$0xf]
        %v799 = vld [vmem:[%s620 + $0x8] sm:$0xf]
        %v800 = vld [vmem:[%s620 + $0xc] sm:$0xf]
        %v801 = vld [vmem:[%s620 + $0x10] sm:$0xf]
        %v802 = vld [vmem:[%s620 + $0x14] sm:$0xf]
        %v803 = vld [vmem:[%s620 + $0x18] sm:$0xf]
        %v804 = vld [vmem:[%s620 + $0x1c] sm:$0xf]
        %v805 = vld [vmem:[%s620 + $0x20] sm:$0xf]
        %v806 = vld [vmem:[%s620 + $0x24] sm:$0xf]
        %v807 = vld [vmem:[%s620 + $0x28] sm:$0xf]
        %v808 = vld [vmem:[%s620 + $0x2c] sm:$0xf]
        %v809 = vld [vmem:[%s620 + $0x30] sm:$0xf]
        %v810 = vld [vmem:[%s620 + $0x34] sm:$0xf]
        %v811 = vld [vmem:[%s620 + $0x38] sm:$0xf]
        %v812 = vld [vmem:[%s620 + $0x3c] sm:$0xf]
        %v813 = vunpack.c.l.bf16 %v797
        %v814 = vunpack.c.l.bf16 %v798
        %v815 = vunpack.c.l.bf16 %v799
        %v816 = vunpack.c.l.bf16 %v800
        %v817 = vunpack.c.l.bf16 %v801
        %v818 = vunpack.c.l.bf16 %v802
        %v819 = vunpack.c.l.bf16 %v803
        %v820 = vunpack.c.l.bf16 %v804
        %v821 = vunpack.c.l.bf16 %v805
        %v822 = vunpack.c.l.bf16 %v806
        %v823 = vunpack.c.l.bf16 %v807
        %v824 = vunpack.c.l.bf16 %v808
        %v825 = vunpack.c.l.bf16 %v809
        %v826 = vunpack.c.l.bf16 %v810
        %v827 = vunpack.c.l.bf16 %v811
        %v828 = vunpack.c.l.bf16 %v812
        %v845 = vunpack.c.l.b16 %v773
        %v846 = vunpack.c.l.b16 %v774
        %v847 = vunpack.c.l.b16 %v775
        %v848 = vunpack.c.l.b16 %v776
        %v849 = vunpack.c.l.b16 %v777
        %v850 = vunpack.c.l.b16 %v778
        %v851 = vunpack.c.l.b16 %v779
        %v852 = vunpack.c.l.b16 %v780
        %v853 = vunpack.c.l.b16 %v781
        %v854 = vunpack.c.l.b16 %v782
        %v855 = vunpack.c.l.b16 %v783
        %v856 = vunpack.c.l.b16 %v784
        %v857 = vunpack.c.l.b16 %v785
        %v858 = vunpack.c.l.b16 %v786
        %v859 = vunpack.c.l.b16 %v787
        %v860 = vunpack.c.l.b16 %v788
        %v861 = vpack.c.b16 %v846, %v845
        %v862 = vpack.c.b16 %v848, %v847
        %v863 = vpack.c.b16 %v850, %v849
        %v864 = vpack.c.b16 %v852, %v851
        %v865 = vpack.c.b16 %v854, %v853
        %v866 = vpack.c.b16 %v856, %v855
        %v867 = vpack.c.b16 %v858, %v857
        %v868 = vpack.c.b16 %v860, %v859
        %877 = vmatprep.subr.bf16.mxu0 0
        %878 = vmatpush1.bf16.msra.mxu0 %v789
        %879 = vmatprep.subr.bf16.mxu0 0
        %880 = vmatpush1.bf16.msra.mxu0 %v790
        %881 = vmatprep.subr.bf16.mxu0 0
        %882 = vmatpush1.bf16.msra.mxu0 %v791
        %883 = vmatprep.subr.bf16.mxu0 0
        %884 = vmatpush1.bf16.msra.mxu0 %v792
        %885 = vmatprep.subr.bf16.mxu0 0
        %886 = vmatpush1.bf16.msra.mxu0 %v793
        %887 = vmatprep.subr.bf16.mxu0 0
        %888 = vmatpush1.bf16.msra.mxu0 %v794
        %889 = vmatprep.subr.bf16.mxu0 0
        %890 = vmatpush1.bf16.msra.mxu0 %v795
        %891 = vmatprep.subr.bf16.mxu0 0
        %892 = vmatpush1.bf16.msra.mxu0 %v796
        %893 = vmatprep.subr.bf16.mxu0 0
        %894 = vmatpush1.bf16.msra.mxu0 0
        %895 = vmatprep.subr.bf16.mxu0 0
        %896 = vmatpush1.bf16.msra.mxu0 0
        %897 = vmatprep.subr.bf16.mxu0 0
        %898 = vmatpush1.bf16.msra.mxu0 0
        %899 = vmatprep.subr.bf16.mxu0 0
        %900 = vmatpush1.bf16.msra.mxu0 0
        %901 = vmatprep.subr.bf16.mxu0 0
        %902 = vmatpush1.bf16.msra.mxu0 0
        %903 = vmatprep.subr.bf16.mxu0 0
        %904 = vmatpush1.bf16.msra.mxu0 0
        %905 = vmatprep.subr.bf16.mxu0 0
        %906 = vmatpush1.bf16.msra.mxu0 0
        %907 = vmatprep.subr.bf16.mxu0 0
        %908 = vmatpush1.bf16.msra.mxu0 0
        %909 = vmatprep.mubr.bf16.mxu0 0
        %910 = vmatmul.mubr.bf16.gmra.mrb[0].mxu0 %v861
        %v911 = vpop.f32.mrb[0].mxu0
        %v912 = vadd.f32 %v813, %v911
        %v913 = vpop.f32.mrb[0].mxu0
        %v914 = vpop.f32.mrb[0].mxu0
        %v915 = vadd.f32 %v814, %v914
        %v916 = vpop.f32.mrb[0].mxu0
        %917 = vmatprep.mubr.bf16.mxu0 0
        %918 = vmatmul.mubr.bf16.gmra.mrb[0].mxu0 %v862
        %v919 = vpop.f32.mrb[0].mxu0
        %v920 = vadd.f32 %v815, %v919
        %v921 = vpop.f32.mrb[0].mxu0
        %v922 = vpop.f32.mrb[0].mxu0
        %v923 = vadd.f32 %v816, %v922
        %v924 = vpop.f32.mrb[0].mxu0
        %925 = vmatprep.mubr.bf16.mxu0 0
        %926 = vmatmul.mubr.bf16.gmra.mrb[0].mxu0 %v863
        %v927 = vpop.f32.mrb[0].mxu0
        %v928 = vadd.f32 %v817, %v927
        %v929 = vpop.f32.mrb[0].mxu0
        %v930 = vpop.f32.mrb[0].mxu0
        %v931 = vadd.f32 %v818, %v930
        %v932 = vpop.f32.mrb[0].mxu0
        %933 = vmatprep.mubr.bf16.mxu0 0
        %934 = vmatmul.mubr.bf16.gmra.mrb[0].mxu0 %v864
        %v935 = vpop.f32.mrb[0].mxu0
        %v936 = vadd.f32 %v819, %v935
        %v937 = vpop.f32.mrb[0].mxu0
        %v938 = vpop.f32.mrb[0].mxu0
        %v939 = vadd.f32 %v820, %v938
        %v940 = vpop.f32.mrb[0].mxu0
        %941 = vmatprep.mubr.bf16.mxu0 0
        %942 = vmatmul.mubr.bf16.gmra.mrb[0].mxu0 %v865
        %v943 = vpop.f32.mrb[0].mxu0
        %v944 = vadd.f32 %v821, %v943
        %v945 = vpop.f32.mrb[0].mxu0
        %v946 = vpop.f32.mrb[0].mxu0
        %v947 = vadd.f32 %v822, %v946
        %v948 = vpop.f32.mrb[0].mxu0
        %949 = vmatprep.mubr.bf16.mxu0 0
        %950 = vmatmul.mubr.bf16.gmra.mrb[0].mxu0 %v866
        %v951 = vpop.f32.mrb[0].mxu0
        %v952 = vadd.f32 %v823, %v951
        %v953 = vpop.f32.mrb[0].mxu0
        %v954 = vpop.f32.mrb[0].mxu0
        %v955 = vadd.f32 %v824, %v954
        %v956 = vpop.f32.mrb[0].mxu0
        %957 = vmatprep.mubr.bf16.mxu0 0
        %958 = vmatmul.mubr.bf16.gmra.mrb[0].mxu0 %v867
        %v959 = vpop.f32.mrb[0].mxu0
        %v960 = vadd.f32 %v825, %v959
        %v961 = vpop.f32.mrb[0].mxu0
        %v962 = vpop.f32.mrb[0].mxu0
        %v963 = vadd.f32 %v826, %v962
        %v964 = vpop.f32.mrb[0].mxu0
        %965 = vmatprep.mubr.bf16.mxu0 0
        %966 = vmatmul.mubr.bf16.gmra.mrb[0].mxu0 %v868
        %v967 = vpop.f32.mrb[0].mxu0
        %v968 = vadd.f32 %v827, %v967
        %v969 = vpop.f32.mrb[0].mxu0
        %v970 = vpop.f32.mrb[0].mxu0
        %v971 = vadd.f32 %v828, %v970
        %v972 = vpop.f32.mrb[0].mxu0
        %973 = vdwg.mxu0
        %v974 = vpack.c.bf16 %v915, %v912
        %v975 = vpack.c.bf16 %v923, %v920
        %v976 = vpack.c.bf16 %v931, %v928
        %v977 = vpack.c.bf16 %v939, %v936
        %v978 = vpack.c.bf16 %v947, %v944
        %v979 = vpack.c.bf16 %v955, %v952
        %v980 = vpack.c.bf16 %v963, %v960
        %v981 = vpack.c.bf16 %v971, %v968
        %v982 = vld [vmem:[%s629] sm:$0xf]
        %v983 = vld [vmem:[%s629 + $0x4] sm:$0xf]
        %v984 = vld [vmem:[%s629 + $0x8] sm:$0xf]
        %v985 = vld [vmem:[%s629 + $0xc] sm:$0xf]
        %v986 = vld [vmem:[%s629 + $0x10] sm:$0xf]
        %v987 = vld [vmem:[%s629 + $0x14] sm:$0xf]
        %v988 = vld [vmem:[%s629 + $0x18] sm:$0xf]
        %v989 = vld [vmem:[%s629 + $0x1c] sm:$0xf]
        %v990 = vld [vmem:[%s629 + $0x20] sm:$0xf]
        %v991 = vld [vmem:[%s629 + $0x24] sm:$0xf]
        %v992 = vld [vmem:[%s629 + $0x28] sm:$0xf]
        %v993 = vld [vmem:[%s629 + $0x2c] sm:$0xf]
        %v994 = vld [vmem:[%s629 + $0x30] sm:$0xf]
        %v995 = vld [vmem:[%s629 + $0x34] sm:$0xf]
        %v996 = vld [vmem:[%s629 + $0x38] sm:$0xf]
        %v997 = vld [vmem:[%s629 + $0x3c] sm:$0xf]
        %v998 = vld [vmem:[%s716] sm:$0x1]
        %v1000 = vlaneseq
        %v1001 = vshrl.u32 %v1000, 7
        %v1002 = vsub.s32 0, %v1001
        %v1003 = vrot.slane %v998, %v1002
        %v1021 = vunpack.c.l.b16 %v982
        %v1022 = vunpack.c.l.b16 %v983
        %v1023 = vunpack.c.l.b16 %v984
        %v1024 = vunpack.c.l.b16 %v985
        %v1025 = vunpack.c.l.b16 %v986
        %v1026 = vunpack.c.l.b16 %v987
        %v1027 = vunpack.c.l.b16 %v988
        %v1028 = vunpack.c.l.b16 %v989
        %v1029 = vunpack.c.l.b16 %v990
        %v1030 = vunpack.c.l.b16 %v991
        %v1031 = vunpack.c.l.b16 %v992
        %v1032 = vunpack.c.l.b16 %v993
        %v1033 = vunpack.c.l.b16 %v994
        %v1034 = vunpack.c.l.b16 %v995
        %v1035 = vunpack.c.l.b16 %v996
        %v1036 = vunpack.c.l.b16 %v997
        %v1037 = vpack.c.b16 %v1022, %v1021
        %v1038 = vpack.c.b16 %v1024, %v1023
        %v1039 = vpack.c.b16 %v1026, %v1025
        %v1040 = vpack.c.b16 %v1028, %v1027
        %v1041 = vpack.c.b16 %v1030, %v1029
        %v1042 = vpack.c.b16 %v1032, %v1031
        %v1043 = vpack.c.b16 %v1034, %v1033
        %v1044 = vpack.c.b16 %v1036, %v1035
        %1053 = vmatprep.subr.bf16.mxu0 0
        %1054 = vmatpush1.bf16.msra.mxu0 %v1037
        %1055 = vmatprep.subr.bf16.mxu0 0
        %1056 = vmatpush1.bf16.msra.mxu0 %v1038
        %1057 = vmatprep.subr.bf16.mxu0 0
        %1058 = vmatpush1.bf16.msra.mxu0 %v1039
        %1059 = vmatprep.subr.bf16.mxu0 0
        %1060 = vmatpush1.bf16.msra.mxu0 %v1040
        %1061 = vmatprep.subr.bf16.mxu0 0
        %1062 = vmatpush1.bf16.msra.mxu0 %v1041
        %1063 = vmatprep.subr.bf16.mxu0 0
        %1064 = vmatpush1.bf16.msra.mxu0 %v1042
        %1065 = vmatprep.subr.bf16.mxu0 0
        %1066 = vmatpush1.bf16.msra.mxu0 %v1043
        %1067 = vmatprep.subr.bf16.mxu0 0
        %1068 = vmatpush1.bf16.msra.mxu0 %v1044
        %1069 = vmatprep.subr.bf16.mxu0 0
        %1070 = vmatpush1.bf16.msra.mxu0 0
        %1071 = vmatprep.subr.bf16.mxu0 0
        %1072 = vmatpush1.bf16.msra.mxu0 0
        %1073 = vmatprep.subr.bf16.mxu0 0
        %1074 = vmatpush1.bf16.msra.mxu0 0
        %1075 = vmatprep.subr.bf16.mxu0 0
        %1076 = vmatpush1.bf16.msra.mxu0 0
        %1077 = vmatprep.subr.bf16.mxu0 0
        %1078 = vmatpush1.bf16.msra.mxu0 0
        %1079 = vmatprep.subr.bf16.mxu0 0
        %1080 = vmatpush1.bf16.msra.mxu0 0
        %1081 = vmatprep.subr.bf16.mxu0 0
        %1082 = vmatpush1.bf16.msra.mxu0 0
        %1083 = vmatprep.subr.bf16.mxu0 0
        %1084 = vmatpush1.bf16.msra.mxu0 0
        %1085 = vmatprep.mubr.bf16.mxu0 0
        %1086 = vmatmul.mubr.bf16.gmra.mrb[0].mxu0 %v974
        %v1087 = vpop.f32.mrb[0].mxu0
        %v1088 = vadd.f32 %v1003, %v1087
        %v1089 = vpop.f32.mrb[0].mxu0
        %v1090 = vpop.f32.mrb[0].mxu0
        %v1091 = vadd.f32 %v1003, %v1090
        %v1092 = vpop.f32.mrb[0].mxu0
        %1093 = vmatprep.mubr.bf16.mxu0 0
        %1094 = vmatmul.mubr.bf16.gmra.mrb[0].mxu0 %v975
        %v1095 = vpop.f32.mrb[0].mxu0
        %v1096 = vadd.f32 %v1003, %v1095
        %v1097 = vpop.f32.mrb[0].mxu0
        %v1098 = vpop.f32.mrb[0].mxu0
        %v1099 = vadd.f32 %v1003, %v1098
        %v1100 = vpop.f32.mrb[0].mxu0
        %1101 = vmatprep.mubr.bf16.mxu0 0
        %1102 = vmatmul.mubr.bf16.gmra.mrb[0].mxu0 %v976
        %v1103 = vpop.f32.mrb[0].mxu0
        %v1104 = vadd.f32 %v1003, %v1103
        %v1105 = vpop.f32.mrb[0].mxu0
        %v1106 = vpop.f32.mrb[0].mxu0
        %v1107 = vadd.f32 %v1003, %v1106
        %v1108 = vpop.f32.mrb[0].mxu0
        %1109 = vmatprep.mubr.bf16.mxu0 0
        %1110 = vmatmul.mubr.bf16.gmra.mrb[0].mxu0 %v977
        %v1111 = vpop.f32.mrb[0].mxu0
        %v1112 = vadd.f32 %v1003, %v1111
        %v1113 = vpop.f32.mrb[0].mxu0
        %v1114 = vpop.f32.mrb[0].mxu0
        %v1115 = vadd.f32 %v1003, %v1114
        %v1116 = vpop.f32.mrb[0].mxu0
        %1117 = vmatprep.mubr.bf16.mxu0 0
        %1118 = vmatmul.mubr.bf16.gmra.mrb[0].mxu0 %v978
        %v1119 = vpop.f32.mrb[0].mxu0
        %v1120 = vadd.f32 %v1003, %v1119
        %v1121 = vpop.f32.mrb[0].mxu0
        %v1122 = vpop.f32.mrb[0].mxu0
        %v1123 = vadd.f32 %v1003, %v1122
        %v1124 = vpop.f32.mrb[0].mxu0
        %1125 = vmatprep.mubr.bf16.mxu0 0
        %1126 = vmatmul.mubr.bf16.gmra.mrb[0].mxu0 %v979
        %v1127 = vpop.f32.mrb[0].mxu0
        %v1128 = vadd.f32 %v1003, %v1127
        %v1129 = vpop.f32.mrb[0].mxu0
        %v1130 = vpop.f32.mrb[0].mxu0
        %v1131 = vadd.f32 %v1003, %v1130
        %v1132 = vpop.f32.mrb[0].mxu0
        %1133 = vmatprep.mubr.bf16.mxu0 0
        %1134 = vmatmul.mubr.bf16.gmra.mrb[0].mxu0 %v980
        %v1135 = vpop.f32.mrb[0].mxu0
        %v1136 = vadd.f32 %v1003, %v1135
        %v1137 = vpop.f32.mrb[0].mxu0
        %v1138 = vpop.f32.mrb[0].mxu0
        %v1139 = vadd.f32 %v1003, %v1138
        %v1140 = vpop.f32.mrb[0].mxu0
        %1141 = vmatprep.mubr.bf16.mxu0 0
        %1142 = vmatmul.mubr.bf16.gmra.mrb[0].mxu0 %v981
        %v1143 = vpop.f32.mrb[0].mxu0
        %v1144 = vadd.f32 %v1003, %v1143
        %v1145 = vpop.f32.mrb[0].mxu0
        %v1146 = vpop.f32.mrb[0].mxu0
        %v1147 = vadd.f32 %v1003, %v1146
        %v1148 = vpop.f32.mrb[0].mxu0
        %1149 = vdwg.mxu0
        %v1150 = vmax.f32 %v1088, 0.0
        %v1151 = vmax.f32 %v1091, 0.0
        %v1152 = vmax.f32 %v1096, 0.0
        %v1153 = vmax.f32 %v1099, 0.0
        %v1154 = vmax.f32 %v1104, 0.0
        %v1155 = vmax.f32 %v1107, 0.0
        %v1156 = vmax.f32 %v1112, 0.0
        %v1157 = vmax.f32 %v1115, 0.0
        %v1158 = vmax.f32 %v1120, 0.0
        %v1159 = vmax.f32 %v1123, 0.0
        %v1160 = vmax.f32 %v1128, 0.0
        %v1161 = vmax.f32 %v1131, 0.0
        %v1162 = vmax.f32 %v1136, 0.0
        %v1163 = vmax.f32 %v1139, 0.0
        %v1164 = vmax.f32 %v1144, 0.0
        %v1165 = vmax.f32 %v1147, 0.0
        %v1166 = vpack.c.bf16 %v1151, %v1150
        %v1167 = vpack.c.bf16 %v1153, %v1152
        %v1168 = vpack.c.bf16 %v1155, %v1154
        %v1169 = vpack.c.bf16 %v1157, %v1156
        %v1170 = vpack.c.bf16 %v1159, %v1158
        %v1171 = vpack.c.bf16 %v1161, %v1160
        %v1172 = vpack.c.bf16 %v1163, %v1162
        %v1173 = vpack.c.bf16 %v1165, %v1164
        %v1174 = vld [vmem:[%s638] sm:$0xf]
        %v1175 = vld [vmem:[%s638 + $0x4] sm:$0xf]
        %v1176 = vld [vmem:[%s638 + $0x8] sm:$0xf]
        %v1177 = vld [vmem:[%s638 + $0xc] sm:$0xf]
        %v1178 = vld [vmem:[%s638 + $0x10] sm:$0xf]
        %v1179 = vld [vmem:[%s638 + $0x14] sm:$0xf]
        %v1180 = vld [vmem:[%s638 + $0x18] sm:$0xf]
        %v1181 = vld [vmem:[%s638 + $0x1c] sm:$0xf]
        %v1182 = vld [vmem:[%s638 + $0x20] sm:$0xf]
        %v1183 = vld [vmem:[%s638 + $0x24] sm:$0xf]
        %v1184 = vld [vmem:[%s638 + $0x28] sm:$0xf]
        %v1185 = vld [vmem:[%s638 + $0x2c] sm:$0xf]
        %v1186 = vld [vmem:[%s638 + $0x30] sm:$0xf]
        %v1187 = vld [vmem:[%s638 + $0x34] sm:$0xf]
        %v1188 = vld [vmem:[%s638 + $0x38] sm:$0xf]
        %v1189 = vld [vmem:[%s638 + $0x3c] sm:$0xf]
        %v1190 = vld [vmem:[%s719] sm:$0x1]
        %v1192 = vlaneseq
        %v1193 = vshrl.u32 %v1192, 7
        %v1194 = vsub.s32 0, %v1193
        %v1195 = vrot.slane %v1190, %v1194
        %v1213 = vunpack.c.l.b16 %v1174
        %v1214 = vunpack.c.l.b16 %v1175
        %v1215 = vunpack.c.l.b16 %v1176
        %v1216 = vunpack.c.l.b16 %v1177
        %v1217 = vunpack.c.l.b16 %v1178
        %v1218 = vunpack.c.l.b16 %v1179
        %v1219 = vunpack.c.l.b16 %v1180
        %v1220 = vunpack.c.l.b16 %v1181
        %v1221 = vunpack.c.l.b16 %v1182
        %v1222 = vunpack.c.l.b16 %v1183
        %v1223 = vunpack.c.l.b16 %v1184
        %v1224 = vunpack.c.l.b16 %v1185
        %v1225 = vunpack.c.l.b16 %v1186
        %v1226 = vunpack.c.l.b16 %v1187
        %v1227 = vunpack.c.l.b16 %v1188
        %v1228 = vunpack.c.l.b16 %v1189
        %v1229 = vpack.c.b16 %v1214, %v1213
        %v1230 = vpack.c.b16 %v1216, %v1215
        %v1231 = vpack.c.b16 %v1218, %v1217
        %v1232 = vpack.c.b16 %v1220, %v1219
        %v1233 = vpack.c.b16 %v1222, %v1221
        %v1234 = vpack.c.b16 %v1224, %v1223
        %v1235 = vpack.c.b16 %v1226, %v1225
        %v1236 = vpack.c.b16 %v1228, %v1227
        %1245 = vmatprep.subr.bf16.mxu0 0
        %1246 = vmatpush1.bf16.msra.mxu0 %v1229
        %1247 = vmatprep.subr.bf16.mxu0 0
        %1248 = vmatpush1.bf16.msra.mxu0 %v1230
        %1249 = vmatprep.subr.bf16.mxu0 0
        %1250 = vmatpush1.bf16.msra.mxu0 %v1231
        %1251 = vmatprep.subr.bf16.mxu0 0
        %1252 = vmatpush1.bf16.msra.mxu0 %v1232
        %1253 = vmatprep.subr.bf16.mxu0 0
        %1254 = vmatpush1.bf16.msra.mxu0 %v1233
        %1255 = vmatprep.subr.bf16.mxu0 0
        %1256 = vmatpush1.bf16.msra.mxu0 %v1234
        %1257 = vmatprep.subr.bf16.mxu0 0
        %1258 = vmatpush1.bf16.msra.mxu0 %v1235
        %1259 = vmatprep.subr.bf16.mxu0 0
        %1260 = vmatpush1.bf16.msra.mxu0 %v1236
        %1261 = vmatprep.subr.bf16.mxu0 0
        %1262 = vmatpush1.bf16.msra.mxu0 0
        %1263 = vmatprep.subr.bf16.mxu0 0
        %1264 = vmatpush1.bf16.msra.mxu0 0
        %1265 = vmatprep.subr.bf16.mxu0 0
        %1266 = vmatpush1.bf16.msra.mxu0 0
        %1267 = vmatprep.subr.bf16.mxu0 0
        %1268 = vmatpush1.bf16.msra.mxu0 0
        %1269 = vmatprep.subr.bf16.mxu0 0
        %1270 = vmatpush1.bf16.msra.mxu0 0
        %1271 = vmatprep.subr.bf16.mxu0 0
        %1272 = vmatpush1.bf16.msra.mxu0 0
        %1273 = vmatprep.subr.bf16.mxu0 0
        %1274 = vmatpush1.bf16.msra.mxu0 0
        %1275 = vmatprep.subr.bf16.mxu0 0
        %1276 = vmatpush1.bf16.msra.mxu0 0
        %1277 = vmatprep.mubr.bf16.mxu0 0
        %1278 = vmatmul.mubr.bf16.gmra.mrb[0].mxu0 %v1166
        %v1279 = vpop.f32.mrb[0].mxu0
        %v1280 = vadd.f32 %v1195, %v1279
        %v1281 = vpop.f32.mrb[0].mxu0
        %v1282 = vpop.f32.mrb[0].mxu0
        %v1283 = vadd.f32 %v1195, %v1282
        %v1284 = vpop.f32.mrb[0].mxu0
        %1285 = vmatprep.mubr.bf16.mxu0 0
        %1286 = vmatmul.mubr.bf16.gmra.mrb[0].mxu0 %v1167
        %v1287 = vpop.f32.mrb[0].mxu0
        %v1288 = vadd.f32 %v1195, %v1287
        %v1289 = vpop.f32.mrb[0].mxu0
        %v1290 = vpop.f32.mrb[0].mxu0
        %v1291 = vadd.f32 %v1195, %v1290
        %v1292 = vpop.f32.mrb[0].mxu0
        %1293 = vmatprep.mubr.bf16.mxu0 0
        %1294 = vmatmul.mubr.bf16.gmra.mrb[0].mxu0 %v1168
        %v1295 = vpop.f32.mrb[0].mxu0
        %v1296 = vadd.f32 %v1195, %v1295
        %v1297 = vpop.f32.mrb[0].mxu0
        %v1298 = vpop.f32.mrb[0].mxu0
        %v1299 = vadd.f32 %v1195, %v1298
        %v1300 = vpop.f32.mrb[0].mxu0
        %1301 = vmatprep.mubr.bf16.mxu0 0
        %1302 = vmatmul.mubr.bf16.gmra.mrb[0].mxu0 %v1169
        %v1303 = vpop.f32.mrb[0].mxu0
        %v1304 = vadd.f32 %v1195, %v1303
        %v1305 = vpop.f32.mrb[0].mxu0
        %v1306 = vpop.f32.mrb[0].mxu0
        %v1307 = vadd.f32 %v1195, %v1306
        %v1308 = vpop.f32.mrb[0].mxu0
        %1309 = vmatprep.mubr.bf16.mxu0 0
        %1310 = vmatmul.mubr.bf16.gmra.mrb[0].mxu0 %v1170
        %v1311 = vpop.f32.mrb[0].mxu0
        %v1312 = vadd.f32 %v1195, %v1311
        %v1313 = vpop.f32.mrb[0].mxu0
        %v1314 = vpop.f32.mrb[0].mxu0
        %v1315 = vadd.f32 %v1195, %v1314
        %v1316 = vpop.f32.mrb[0].mxu0
        %1317 = vmatprep.mubr.bf16.mxu0 0
        %1318 = vmatmul.mubr.bf16.gmra.mrb[0].mxu0 %v1171
        %v1319 = vpop.f32.mrb[0].mxu0
        %v1320 = vadd.f32 %v1195, %v1319
        %v1321 = vpop.f32.mrb[0].mxu0
        %v1322 = vpop.f32.mrb[0].mxu0
        %v1323 = vadd.f32 %v1195, %v1322
        %v1324 = vpop.f32.mrb[0].mxu0
        %1325 = vmatprep.mubr.bf16.mxu0 0
        %1326 = vmatmul.mubr.bf16.gmra.mrb[0].mxu0 %v1172
        %v1327 = vpop.f32.mrb[0].mxu0
        %v1328 = vadd.f32 %v1195, %v1327
        %v1329 = vpop.f32.mrb[0].mxu0
        %v1330 = vpop.f32.mrb[0].mxu0
        %v1331 = vadd.f32 %v1195, %v1330
        %v1332 = vpop.f32.mrb[0].mxu0
        %1333 = vmatprep.mubr.bf16.mxu0 0
        %1334 = vmatmul.mubr.bf16.gmra.mrb[0].mxu0 %v1173
        %v1335 = vpop.f32.mrb[0].mxu0
        %v1336 = vadd.f32 %v1195, %v1335
        %v1337 = vpop.f32.mrb[0].mxu0
        %v1338 = vpop.f32.mrb[0].mxu0
        %v1339 = vadd.f32 %v1195, %v1338
        %v1340 = vpop.f32.mrb[0].mxu0
        %1341 = vdwg.mxu0
        %v1342 = vmax.f32 %v1280, 0.0
        %v1343 = vmax.f32 %v1283, 0.0
        %v1344 = vmax.f32 %v1288, 0.0
        %v1345 = vmax.f32 %v1291, 0.0
        %v1346 = vmax.f32 %v1296, 0.0
        %v1347 = vmax.f32 %v1299, 0.0
        %v1348 = vmax.f32 %v1304, 0.0
        %v1349 = vmax.f32 %v1307, 0.0
        %v1350 = vmax.f32 %v1312, 0.0
        %v1351 = vmax.f32 %v1315, 0.0
        %v1352 = vmax.f32 %v1320, 0.0
        %v1353 = vmax.f32 %v1323, 0.0
        %v1354 = vmax.f32 %v1328, 0.0
        %v1355 = vmax.f32 %v1331, 0.0
        %v1356 = vmax.f32 %v1336, 0.0
        %v1357 = vmax.f32 %v1339, 0.0
        %p1358 = scmp.lt.s32.totalorder %s37, 1
        // Predicated region
        $region125: #{tpu_custom_call.1} parent=83 // pred_check
          %p1359 = pneg %p1358
        $region126: #{tpu_custom_call.1} parent=83 // pred_check_branch
          %1361 = sbr.rel (%p1359) target = $region128
        $region127: #{tpu_custom_call.1} parent=83 // pred_region
          %1362 = vst [vmem:[#allocation2] sm:$0xff] %v1342
          %1363 = vst [vmem:[#allocation2 + $0x8] sm:$0xff] %v1343
          %1364 = vst [vmem:[#allocation2 + $0x10] sm:$0xff] %v1344
          %1365 = vst [vmem:[#allocation2 + $0x18] sm:$0xff] %v1345
          %1366 = vst [vmem:[#allocation2 + $0x20] sm:$0xff] %v1346
          %1367 = vst [vmem:[#allocation2 + $0x28] sm:$0xff] %v1347
          %1368 = vst [vmem:[#allocation2 + $0x30] sm:$0xff] %v1348
          %1369 = vst [vmem:[#allocation2 + $0x38] sm:$0xff] %v1349
          %1370 = vst [vmem:[#allocation2 + $0x40] sm:$0xff] %v1350
          %1371 = vst [vmem:[#allocation2 + $0x48] sm:$0xff] %v1351
          %1372 = vst [vmem:[#allocation2 + $0x50] sm:$0xff] %v1352
          %1373 = vst [vmem:[#allocation2 + $0x58] sm:$0xff] %v1353
          %1374 = vst [vmem:[#allocation2 + $0x60] sm:$0xff] %v1354
          %1375 = vst [vmem:[#allocation2 + $0x68] sm:$0xff] %v1355
          %1376 = vst [vmem:[#allocation2 + $0x70] sm:$0xff] %v1356
          %1377 = vst [vmem:[#allocation2 + $0x78] sm:$0xff] %v1357
        $region128: #{tpu_custom_call.1} parent=83 // pred_fallthru
          _
        %p1378 = scmp.eq.s32.totalorder %s37, 1
        // Predicated region
        $region129: #{tpu_custom_call.1} parent=83 // pred_check
          %p1379 = pneg %p1378
        $region130: #{tpu_custom_call.1} parent=83 // pred_check_branch
          %1381 = sbr.rel (%p1379) target = $region132
        $region131: #{tpu_custom_call.1} parent=83 // pred_region
          %v1382 = vlaneseq
          %v1383 = vshrl.u32 %v1382, 7
          %v1384 = vlaneseq
          %v1385 = vand.u32 %v1384, 127
          %vm1386 = vcmp.eq.s32.totalorder %v1383, 0
          %s1387 = sld [smem:[#allocation4]]
          %v1388 = vstv %s1387
          %vm1389 = vcmp.eq.s32.totalorder %v1385, %v1388
          %vm1390 = vmand %vm1386, %vm1389
          %v1391 = vsel %vm1390, 1.0, 0.0
          %v1392 = vadd.f32 %v1391, 0.0
          %vm1393 = vcmp.eq.s32.totalorder %v1383, 1
          %s1394 = sld [smem:[#allocation4 + $0x1]]
          %v1395 = vstv %s1394
          %vm1396 = vcmp.eq.s32.totalorder %v1385, %v1395
          %vm1397 = vmand %vm1393, %vm1396
          %v1398 = vsel %vm1397, 1.0, 0.0
          %v1399 = vadd.f32 %v1392, %v1398
          %v1400 = vpack.c.bf16 %v1399, %v1399
          %v1401 = vpack.c.bf16 %v1343, %v1342
          %v1402 = vpack.c.bf16 %v1345, %v1344
          %v1403 = vpack.c.bf16 %v1347, %v1346
          %v1404 = vpack.c.bf16 %v1349, %v1348
          %v1405 = vpack.c.bf16 %v1351, %v1350
          %v1406 = vpack.c.bf16 %v1353, %v1352
          %v1407 = vpack.c.bf16 %v1355, %v1354
          %v1408 = vpack.c.bf16 %v1357, %v1356
          %1409 = vmatprep.subr.bf16.mxu0 0
          %1410 = vmatpush1.bf16.msra.mxu0 %v1401
          %1411 = vmatprep.subr.bf16.mxu0 0
          %1412 = vmatpush1.bf16.msra.mxu0 %v1402
          %1413 = vmatprep.subr.bf16.mxu0 0
          %1414 = vmatpush1.bf16.msra.mxu0 %v1403
          %1415 = vmatprep.subr.bf16.mxu0 0
          %1416 = vmatpush1.bf16.msra.mxu0 %v1404
          %1417 = vmatprep.subr.bf16.mxu0 0
          %1418 = vmatpush1.bf16.msra.mxu0 %v1405
          %1419 = vmatprep.subr.bf16.mxu0 0
          %1420 = vmatpush1.bf16.msra.mxu0 %v1406
          %1421 = vmatprep.subr.bf16.mxu0 0
          %1422 = vmatpush1.bf16.msra.mxu0 %v1407
          %1423 = vmatprep.subr.bf16.mxu0 0
          %1424 = vmatpush1.bf16.msra.mxu0 %v1408
          %1425 = vmatprep.subr.bf16.mxu0 0
          %1426 = vmatpush1.bf16.msra.mxu0 0
          %1427 = vmatprep.subr.bf16.mxu0 0
          %1428 = vmatpush1.bf16.msra.mxu0 0
          %1429 = vmatprep.subr.bf16.mxu0 0
          %1430 = vmatpush1.bf16.msra.mxu0 0
          %1431 = vmatprep.subr.bf16.mxu0 0
          %1432 = vmatpush1.bf16.msra.mxu0 0
          %1433 = vmatprep.subr.bf16.mxu0 0
          %1434 = vmatpush1.bf16.msra.mxu0 0
          %1435 = vmatprep.subr.bf16.mxu0 0
          %1436 = vmatpush1.bf16.msra.mxu0 0
          %1437 = vmatprep.subr.bf16.mxu0 0
          %1438 = vmatpush1.bf16.msra.mxu0 0
          %1439 = vmatprep.subr.bf16.mxu0 0
          %1440 = vmatpush1.bf16.msra.mxu0 0
          %1441 = vmatprep.mubr.bf16.mxu0 0
          %1442 = vmatmul.mubr.bf16.gmra.mrb[0].mxu0 %v1400
          %v1443 = vpop.f32.mrb[0].mxu0
          %v1444 = vadd.f32 0.0, %v1443
          %v1445 = vpop.f32.mrb[0].mxu0
          %v1446 = vpop.f32.mrb[0].mxu0
          %v1447 = vpop.f32.mrb[0].mxu0
          %1448 = vdwg.mxu0
          %v1449 = vpack.c.bf16 %v1444, %v1444
          %v1450 = vld [vmem:[#allocation13] sm:$0xf]
          %v1451 = vld [vmem:[#allocation13 + $0x4] sm:$0xf]
          %v1452 = vld [vmem:[#allocation13 + $0x8] sm:$0xf]
          %v1453 = vld [vmem:[#allocation13 + $0xc] sm:$0xf]
          %v1454 = vld [vmem:[#allocation13 + $0x10] sm:$0xf]
          %v1455 = vld [vmem:[#allocation13 + $0x14] sm:$0xf]
          %v1456 = vld [vmem:[#allocation13 + $0x18] sm:$0xf]
          %v1457 = vld [vmem:[#allocation13 + $0x1c] sm:$0xf]
          %v1458 = vld [vmem:[#allocation13 + $0x20] sm:$0xf]
          %v1459 = vld [vmem:[#allocation13 + $0x24] sm:$0xf]
          %v1460 = vld [vmem:[#allocation13 + $0x28] sm:$0xf]
          %v1461 = vld [vmem:[#allocation13 + $0x2c] sm:$0xf]
          %v1462 = vld [vmem:[#allocation13 + $0x30] sm:$0xf]
          %v1463 = vld [vmem:[#allocation13 + $0x34] sm:$0xf]
          %v1464 = vld [vmem:[#allocation13 + $0x38] sm:$0xf]
          %v1465 = vld [vmem:[#allocation13 + $0x3c] sm:$0xf]
          %v1466 = vld [vmem:[%s9] sm:$0x1]
          %v1468 = vlaneseq
          %v1469 = vshrl.u32 %v1468, 7
          %v1470 = vsub.s32 0, %v1469
          %v1471 = vrot.slane %v1466, %v1470
          %v1489 = vunpack.c.l.b16 %v1450
          %v1490 = vunpack.c.l.b16 %v1451
          %v1491 = vunpack.c.l.b16 %v1452
          %v1492 = vunpack.c.l.b16 %v1453
          %v1493 = vunpack.c.l.b16 %v1454
          %v1494 = vunpack.c.l.b16 %v1455
          %v1495 = vunpack.c.l.b16 %v1456
          %v1496 = vunpack.c.l.b16 %v1457
          %v1497 = vunpack.c.l.b16 %v1458
          %v1498 = vunpack.c.l.b16 %v1459
          %v1499 = vunpack.c.l.b16 %v1460
          %v1500 = vunpack.c.l.b16 %v1461
          %v1501 = vunpack.c.l.b16 %v1462
          %v1502 = vunpack.c.l.b16 %v1463
          %v1503 = vunpack.c.l.b16 %v1464
          %v1504 = vunpack.c.l.b16 %v1465
          %v1505 = vpack.c.b16 %v1490, %v1489
          %v1506 = vpack.c.b16 %v1492, %v1491
          %v1507 = vpack.c.b16 %v1494, %v1493
          %v1508 = vpack.c.b16 %v1496, %v1495
          %v1509 = vpack.c.b16 %v1498, %v1497
          %v1510 = vpack.c.b16 %v1500, %v1499
          %v1511 = vpack.c.b16 %v1502, %v1501
          %v1512 = vpack.c.b16 %v1504, %v1503
          %1521 = vmatprep.subr.bf16.mxu0 0
          %1522 = vmatpush1.bf16.msra.mxu0 %v1505
          %1523 = vmatprep.subr.bf16.mxu0 0
          %1524 = vmatpush1.bf16.msra.mxu0 %v1506
          %1525 = vmatprep.subr.bf16.mxu0 0
          %1526 = vmatpush1.bf16.msra.mxu0 %v1507
          %1527 = vmatprep.subr.bf16.mxu0 0
          %1528 = vmatpush1.bf16.msra.mxu0 %v1508
          %1529 = vmatprep.subr.bf16.mxu0 0
          %1530 = vmatpush1.bf16.msra.mxu0 %v1509
          %1531 = vmatprep.subr.bf16.mxu0 0
          %1532 = vmatpush1.bf16.msra.mxu0 %v1510
          %1533 = vmatprep.subr.bf16.mxu0 0
          %1534 = vmatpush1.bf16.msra.mxu0 %v1511
          %1535 = vmatprep.subr.bf16.mxu0 0
          %1536 = vmatpush1.bf16.msra.mxu0 %v1512
          %1537 = vmatprep.subr.bf16.mxu0 0
          %1538 = vmatpush1.bf16.msra.mxu0 0
          %1539 = vmatprep.subr.bf16.mxu0 0
          %1540 = vmatpush1.bf16.msra.mxu0 0
          %1541 = vmatprep.subr.bf16.mxu0 0
          %1542 = vmatpush1.bf16.msra.mxu0 0
          %1543 = vmatprep.subr.bf16.mxu0 0
          %1544 = vmatpush1.bf16.msra.mxu0 0
          %1545 = vmatprep.subr.bf16.mxu0 0
          %1546 = vmatpush1.bf16.msra.mxu0 0
          %1547 = vmatprep.subr.bf16.mxu0 0
          %1548 = vmatpush1.bf16.msra.mxu0 0
          %1549 = vmatprep.subr.bf16.mxu0 0
          %1550 = vmatpush1.bf16.msra.mxu0 0
          %1551 = vmatprep.subr.bf16.mxu0 0
          %1552 = vmatpush1.bf16.msra.mxu0 0
          %1553 = vmatprep.mubr.bf16.mxu0 0
          %1554 = vmatmul.mubr.bf16.gmra.mrb[0].mxu0 %v1449
          %v1555 = vpop.f32.mrb[0].mxu0
          %v1556 = vadd.f32 %v1471, %v1555
          %v1557 = vpop.f32.mrb[0].mxu0
          %v1558 = vpop.f32.mrb[0].mxu0
          %v1559 = vpop.f32.mrb[0].mxu0
          %1560 = vdwg.mxu0
          %v1561 = vld [vmem:[%s10] sm:$0xff]
          %v1562 = vadd.f32 %v1556, %v1561
          %v1563 = vpack.c.bf16 %v1562, %v1562
          %v1564 = vld [vmem:[#allocation14] sm:$0xf]
          %v1565 = vld [vmem:[#allocation14 + $0x4] sm:$0xf]
          %v1566 = vld [vmem:[#allocation14 + $0x8] sm:$0xf]
          %v1567 = vld [vmem:[#allocation14 + $0xc] sm:$0xf]
          %v1568 = vld [vmem:[#allocation14 + $0x10] sm:$0xf]
          %v1569 = vld [vmem:[#allocation14 + $0x14] sm:$0xf]
          %v1570 = vld [vmem:[#allocation14 + $0x18] sm:$0xf]
          %v1571 = vld [vmem:[#allocation14 + $0x1c] sm:$0xf]
          %v1572 = vld [vmem:[#allocation14 + $0x20] sm:$0xf]
          %v1573 = vld [vmem:[#allocation14 + $0x24] sm:$0xf]
          %v1574 = vld [vmem:[#allocation14 + $0x28] sm:$0xf]
          %v1575 = vld [vmem:[#allocation14 + $0x2c] sm:$0xf]
          %v1576 = vld [vmem:[#allocation14 + $0x30] sm:$0xf]
          %v1577 = vld [vmem:[#allocation14 + $0x34] sm:$0xf]
          %v1578 = vld [vmem:[#allocation14 + $0x38] sm:$0xf]
          %v1579 = vld [vmem:[#allocation14 + $0x3c] sm:$0xf]
          %v1580 = vld [vmem:[%s12] sm:$0x1]
          %v1582 = vlaneseq
          %v1583 = vshrl.u32 %v1582, 7
          %v1584 = vsub.s32 0, %v1583
          %v1585 = vrot.slane %v1580, %v1584
          %v1603 = vunpack.c.l.b16 %v1564
          %v1604 = vunpack.c.l.b16 %v1565
          %v1605 = vunpack.c.l.b16 %v1566
          %v1606 = vunpack.c.l.b16 %v1567
          %v1607 = vunpack.c.l.b16 %v1568
          %v1608 = vunpack.c.l.b16 %v1569
          %v1609 = vunpack.c.l.b16 %v1570
          %v1610 = vunpack.c.l.b16 %v1571
          %v1611 = vunpack.c.l.b16 %v1572
          %v1612 = vunpack.c.l.b16 %v1573
          %v1613 = vunpack.c.l.b16 %v1574
          %v1614 = vunpack.c.l.b16 %v1575
          %v1615 = vunpack.c.l.b16 %v1576
          %v1616 = vunpack.c.l.b16 %v1577
          %v1617 = vunpack.c.l.b16 %v1578
          %v1618 = vunpack.c.l.b16 %v1579
          %v1619 = vpack.c.b16 %v1604, %v1603
          %v1620 = vpack.c.b16 %v1606, %v1605
          %v1621 = vpack.c.b16 %v1608, %v1607
          %v1622 = vpack.c.b16 %v1610, %v1609
          %v1623 = vpack.c.b16 %v1612, %v1611
          %v1624 = vpack.c.b16 %v1614, %v1613
          %v1625 = vpack.c.b16 %v1616, %v1615
          %v1626 = vpack.c.b16 %v1618, %v1617
          %1635 = vmatprep.subr.bf16.mxu0 0
          %1636 = vmatpush1.bf16.msra.mxu0 %v1619
          %1637 = vmatprep.subr.bf16.mxu0 0
          %1638 = vmatpush1.bf16.msra.mxu0 %v1620
          %1639 = vmatprep.subr.bf16.mxu0 0
          %1640 = vmatpush1.bf16.msra.mxu0 %v1621
          %1641 = vmatprep.subr.bf16.mxu0 0
          %1642 = vmatpush1.bf16.msra.mxu0 %v1622
          %1643 = vmatprep.subr.bf16.mxu0 0
          %1644 = vmatpush1.bf16.msra.mxu0 %v1623
          %1645 = vmatprep.subr.bf16.mxu0 0
          %1646 = vmatpush1.bf16.msra.mxu0 %v1624
          %1647 = vmatprep.subr.bf16.mxu0 0
          %1648 = vmatpush1.bf16.msra.mxu0 %v1625
          %1649 = vmatprep.subr.bf16.mxu0 0
          %1650 = vmatpush1.bf16.msra.mxu0 %v1626
          %1651 = vmatprep.subr.bf16.mxu0 0
          %1652 = vmatpush1.bf16.msra.mxu0 0
          %1653 = vmatprep.subr.bf16.mxu0 0
          %1654 = vmatpush1.bf16.msra.mxu0 0
          %1655 = vmatprep.subr.bf16.mxu0 0
          %1656 = vmatpush1.bf16.msra.mxu0 0
          %1657 = vmatprep.subr.bf16.mxu0 0
          %1658 = vmatpush1.bf16.msra.mxu0 0
          %1659 = vmatprep.subr.bf16.mxu0 0
          %1660 = vmatpush1.bf16.msra.mxu0 0
          %1661 = vmatprep.subr.bf16.mxu0 0
          %1662 = vmatpush1.bf16.msra.mxu0 0
          %1663 = vmatprep.subr.bf16.mxu0 0
          %1664 = vmatpush1.bf16.msra.mxu0 0
          %1665 = vmatprep.subr.bf16.mxu0 0
          %1666 = vmatpush1.bf16.msra.mxu0 0
          %1667 = vmatprep.mubr.bf16.mxu0 0
          %1668 = vmatmul.mubr.bf16.gmra.mrb[0].mxu0 %v1563
          %v1669 = vpop.f32.mrb[0].mxu0
          %v1670 = vadd.f32 %v1585, %v1669
          %v1671 = vpop.f32.mrb[0].mxu0
          %v1672 = vpop.f32.mrb[0].mxu0
          %v1673 = vpop.f32.mrb[0].mxu0
          %1674 = vdwg.mxu0
          %vm1675 = vcmp.gt.f32.partialorder %v1670, 20.0
          %v1676 = vmin.f32 %v1670, 20.0
          %v1677 = vmul.f32 %v1676, 1.442695
          %v1678 = vpow.pop %v1677
          %v1679 = vadd.f32 %v1678, 1.0
          %v1680 = vlog2.pop %v1679
          %v1681 = vmul.f32 %v1680, 0.6931472
          %v1682 = vmul.f32 -0.5, %v1678
          %v1683 = vadd.f32 %v1682, 1.0
          %v1684 = vmul.f32 %v1683, %v1678
          %v1685 = vand.u32 2147483647, %v1678
          %vm1686 = vcmp.lt.f32.partialorder %v1685, 0.0004427343
          %v1687 = vsel %vm1686, %v1684, %v1681
          %v1688 = vsel %vm1675, %v1670, %v1687
          %v1689 = vpack.c.bf16 %v1688, %v1688
          %v1690 = vld [vmem:[#allocation16] sm:$0xf]
          %v1691 = vld [vmem:[#allocation16 + $0x4] sm:$0xf]
          %v1692 = vld [vmem:[#allocation16 + $0x8] sm:$0xf]
          %v1693 = vld [vmem:[#allocation16 + $0xc] sm:$0xf]
          %v1694 = vld [vmem:[#allocation16 + $0x10] sm:$0xf]
          %v1695 = vld [vmem:[#allocation16 + $0x14] sm:$0xf]
          %v1696 = vld [vmem:[#allocation16 + $0x18] sm:$0xf]
          %v1697 = vld [vmem:[#allocation16 + $0x1c] sm:$0xf]
          %v1698 = vld [vmem:[#allocation16 + $0x20] sm:$0xf]
          %v1699 = vld [vmem:[#allocation16 + $0x24] sm:$0xf]
          %v1700 = vld [vmem:[#allocation16 + $0x28] sm:$0xf]
          %v1701 = vld [vmem:[#allocation16 + $0x2c] sm:$0xf]
          %v1702 = vld [vmem:[#allocation16 + $0x30] sm:$0xf]
          %v1703 = vld [vmem:[#allocation16 + $0x34] sm:$0xf]
          %v1704 = vld [vmem:[#allocation16 + $0x38] sm:$0xf]
          %v1705 = vld [vmem:[#allocation16 + $0x3c] sm:$0xf]
          %v1706 = vld [vmem:[%s14] sm:$0x1]
          %v1708 = vlaneseq
          %v1709 = vshrl.u32 %v1708, 7
          %v1710 = vsub.s32 0, %v1709
          %v1711 = vrot.slane %v1706, %v1710
          %v1729 = vunpack.c.l.b16 %v1690
          %v1730 = vunpack.c.l.b16 %v1691
          %v1731 = vunpack.c.l.b16 %v1692
          %v1732 = vunpack.c.l.b16 %v1693
          %v1733 = vunpack.c.l.b16 %v1694
          %v1734 = vunpack.c.l.b16 %v1695
          %v1735 = vunpack.c.l.b16 %v1696
          %v1736 = vunpack.c.l.b16 %v1697
          %v1737 = vunpack.c.l.b16 %v1698
          %v1738 = vunpack.c.l.b16 %v1699
          %v1739 = vunpack.c.l.b16 %v1700
          %v1740 = vunpack.c.l.b16 %v1701
          %v1741 = vunpack.c.l.b16 %v1702
          %v1742 = vunpack.c.l.b16 %v1703
          %v1743 = vunpack.c.l.b16 %v1704
          %v1744 = vunpack.c.l.b16 %v1705
          %v1745 = vpack.c.b16 %v1730, %v1729
          %v1746 = vpack.c.b16 %v1732, %v1731
          %v1747 = vpack.c.b16 %v1734, %v1733
          %v1748 = vpack.c.b16 %v1736, %v1735
          %v1749 = vpack.c.b16 %v1738, %v1737
          %v1750 = vpack.c.b16 %v1740, %v1739
          %v1751 = vpack.c.b16 %v1742, %v1741
          %v1752 = vpack.c.b16 %v1744, %v1743
          %1761 = vmatprep.subr.bf16.mxu0 0
          %1762 = vmatpush1.bf16.msra.mxu0 %v1745
          %1763 = vmatprep.subr.bf16.mxu0 0
          %1764 = vmatpush1.bf16.msra.mxu0 %v1746
          %1765 = vmatprep.subr.bf16.mxu0 0
          %1766 = vmatpush1.bf16.msra.mxu0 %v1747
          %1767 = vmatprep.subr.bf16.mxu0 0
          %1768 = vmatpush1.bf16.msra.mxu0 %v1748
          %1769 = vmatprep.subr.bf16.mxu0 0
          %1770 = vmatpush1.bf16.msra.mxu0 %v1749
          %1771 = vmatprep.subr.bf16.mxu0 0
          %1772 = vmatpush1.bf16.msra.mxu0 %v1750
          %1773 = vmatprep.subr.bf16.mxu0 0
          %1774 = vmatpush1.bf16.msra.mxu0 %v1751
          %1775 = vmatprep.subr.bf16.mxu0 0
          %1776 = vmatpush1.bf16.msra.mxu0 %v1752
          %1777 = vmatprep.subr.bf16.mxu0 0
          %1778 = vmatpush1.bf16.msra.mxu0 0
          %1779 = vmatprep.subr.bf16.mxu0 0
          %1780 = vmatpush1.bf16.msra.mxu0 0
          %1781 = vmatprep.subr.bf16.mxu0 0
          %1782 = vmatpush1.bf16.msra.mxu0 0
          %1783 = vmatprep.subr.bf16.mxu0 0
          %1784 = vmatpush1.bf16.msra.mxu0 0
          %1785 = vmatprep.subr.bf16.mxu0 0
          %1786 = vmatpush1.bf16.msra.mxu0 0
          %1787 = vmatprep.subr.bf16.mxu0 0
          %1788 = vmatpush1.bf16.msra.mxu0 0
          %1789 = vmatprep.subr.bf16.mxu0 0
          %1790 = vmatpush1.bf16.msra.mxu0 0
          %1791 = vmatprep.subr.bf16.mxu0 0
          %1792 = vmatpush1.bf16.msra.mxu0 0
          %1793 = vmatprep.mubr.bf16.mxu0 0
          %1794 = vmatmul.mubr.bf16.gmra.mrb[0].mxu0 %v1689
          %v1795 = vpop.f32.mrb[0].mxu0
          %v1796 = vadd.f32 %v1711, %v1795
          %v1797 = vpop.f32.mrb[0].mxu0
          %v1798 = vpop.f32.mrb[0].mxu0
          %v1799 = vpop.f32.mrb[0].mxu0
          %1800 = vdwg.mxu0
          %vm1801 = vcmp.gt.f32.partialorder %v1796, 20.0
          %v1802 = vmin.f32 %v1796, 20.0
          %v1803 = vmul.f32 %v1802, 1.442695
          %v1804 = vpow.pop %v1803
          %v1805 = vadd.f32 %v1804, 1.0
          %v1806 = vlog2.pop %v1805
          %v1807 = vmul.f32 %v1806, 0.6931472
          %v1808 = vmul.f32 -0.5, %v1804
          %v1809 = vadd.f32 %v1808, 1.0
          %v1810 = vmul.f32 %v1809, %v1804
          %v1811 = vand.u32 2147483647, %v1804
          %vm1812 = vcmp.lt.f32.partialorder %v1811, 0.0004427343
          %v1813 = vsel %vm1812, %v1810, %v1807
          %v1814 = vsel %vm1801, %v1796, %v1813
          %v1815 = vpack.c.bf16 %v1814, %v1814
          %v1816 = vld [vmem:[#allocation17] sm:$0xf]
          %v1817 = vld [vmem:[#allocation17 + $0x4] sm:$0xf]
          %v1818 = vld [vmem:[#allocation17 + $0x8] sm:$0xf]
          %v1819 = vld [vmem:[#allocation17 + $0xc] sm:$0xf]
          %v1820 = vld [vmem:[#allocation17 + $0x10] sm:$0xf]
          %v1821 = vld [vmem:[#allocation17 + $0x14] sm:$0xf]
          %v1822 = vld [vmem:[#allocation17 + $0x18] sm:$0xf]
          %v1823 = vld [vmem:[#allocation17 + $0x1c] sm:$0xf]
          %v1824 = vld [vmem:[#allocation17 + $0x20] sm:$0xf]
          %v1825 = vld [vmem:[#allocation17 + $0x24] sm:$0xf]
          %v1826 = vld [vmem:[#allocation17 + $0x28] sm:$0xf]
          %v1827 = vld [vmem:[#allocation17 + $0x2c] sm:$0xf]
          %v1828 = vld [vmem:[#allocation17 + $0x30] sm:$0xf]
          %v1829 = vld [vmem:[#allocation17 + $0x34] sm:$0xf]
          %v1830 = vld [vmem:[#allocation17 + $0x38] sm:$0xf]
          %v1831 = vld [vmem:[#allocation17 + $0x3c] sm:$0xf]
          %v1832 = vld [vmem:[%s16] sm:$0x1]
          %v1834 = vlaneseq
          %v1835 = vshrl.u32 %v1834, 7
          %v1836 = vsub.s32 0, %v1835
          %v1837 = vrot.slane %v1832, %v1836
          %v1855 = vunpack.c.l.b16 %v1816
          %v1856 = vunpack.c.l.b16 %v1817
          %v1857 = vunpack.c.l.b16 %v1818
          %v1858 = vunpack.c.l.b16 %v1819
          %v1859 = vunpack.c.l.b16 %v1820
          %v1860 = vunpack.c.l.b16 %v1821
          %v1861 = vunpack.c.l.b16 %v1822
          %v1862 = vunpack.c.l.b16 %v1823
          %v1863 = vunpack.c.l.b16 %v1824
          %v1864 = vunpack.c.l.b16 %v1825
          %v1865 = vunpack.c.l.b16 %v1826
          %v1866 = vunpack.c.l.b16 %v1827
          %v1867 = vunpack.c.l.b16 %v1828
          %v1868 = vunpack.c.l.b16 %v1829
          %v1869 = vunpack.c.l.b16 %v1830
          %v1870 = vunpack.c.l.b16 %v1831
          %v1871 = vpack.c.b16 %v1856, %v1855
          %v1872 = vpack.c.b16 %v1858, %v1857
          %v1873 = vpack.c.b16 %v1860, %v1859
          %v1874 = vpack.c.b16 %v1862, %v1861
          %v1875 = vpack.c.b16 %v1864, %v1863
          %v1876 = vpack.c.b16 %v1866, %v1865
          %v1877 = vpack.c.b16 %v1868, %v1867
          %v1878 = vpack.c.b16 %v1870, %v1869
          %1887 = vmatprep.subr.bf16.mxu0 0
          %1888 = vmatpush1.bf16.msra.mxu0 %v1871
          %1889 = vmatprep.subr.bf16.mxu0 0
          %1890 = vmatpush1.bf16.msra.mxu0 %v1872
          %1891 = vmatprep.subr.bf16.mxu0 0
          %1892 = vmatpush1.bf16.msra.mxu0 %v1873
          %1893 = vmatprep.subr.bf16.mxu0 0
          %1894 = vmatpush1.bf16.msra.mxu0 %v1874
          %1895 = vmatprep.subr.bf16.mxu0 0
          %1896 = vmatpush1.bf16.msra.mxu0 %v1875
          %1897 = vmatprep.subr.bf16.mxu0 0
          %1898 = vmatpush1.bf16.msra.mxu0 %v1876
          %1899 = vmatprep.subr.bf16.mxu0 0
          %1900 = vmatpush1.bf16.msra.mxu0 %v1877
          %1901 = vmatprep.subr.bf16.mxu0 0
          %1902 = vmatpush1.bf16.msra.mxu0 %v1878
          %1903 = vmatprep.subr.bf16.mxu0 0
          %1904 = vmatpush1.bf16.msra.mxu0 0
          %1905 = vmatprep.subr.bf16.mxu0 0
          %1906 = vmatpush1.bf16.msra.mxu0 0
          %1907 = vmatprep.subr.bf16.mxu0 0
          %1908 = vmatpush1.bf16.msra.mxu0 0
          %1909 = vmatprep.subr.bf16.mxu0 0
          %1910 = vmatpush1.bf16.msra.mxu0 0
          %1911 = vmatprep.subr.bf16.mxu0 0
          %1912 = vmatpush1.bf16.msra.mxu0 0
          %1913 = vmatprep.subr.bf16.mxu0 0
          %1914 = vmatpush1.bf16.msra.mxu0 0
          %1915 = vmatprep.subr.bf16.mxu0 0
          %1916 = vmatpush1.bf16.msra.mxu0 0
          %1917 = vmatprep.subr.bf16.mxu0 0
          %1918 = vmatpush1.bf16.msra.mxu0 0
          %1919 = vmatprep.mubr.bf16.mxu0 0
          %1920 = vmatmul.mubr.bf16.gmra.mrb[0].mxu0 %v1815
          %v1921 = vpop.f32.mrb[0].mxu0
          %v1922 = vadd.f32 %v1837, %v1921
          %v1923 = vpop.f32.mrb[0].mxu0
          %v1924 = vpop.f32.mrb[0].mxu0
          %v1925 = vpop.f32.mrb[0].mxu0
          %1926 = vdwg.mxu0
          %1927 = vst [vmem:[#allocation19] sm:$0xff] %v1922
        $region132: #{tpu_custom_call.1} parent=83 // pred_fallthru
          _
        // Predicated region
        $region133: #{tpu_custom_call.1} parent=83 // pred_check
          %p1928 = pneg %p411
        $region134: #{tpu_custom_call.1} parent=83 // pred_check_branch
          %1930 = sbr.rel (%p1928) target = $region136
        $region135: #{tpu_custom_call.1} parent=83 // pred_region
          %s1932 = ssub.s32 128, 128
          %1933 = vsyncadd [#allocation7], %s1932
          %s1935 = sshll.u32 [#allocation19], 4
          %s1936 = int_to_ptr.vmem [resolvable:$true] %s1935
          %1938 = dma.vmem_to_hbm [thread:$0]  %s1936, 128, %s17, [#allocation7]
        $region136: #{tpu_custom_call.1} parent=83 // pred_fallthru
          _
        // Predicated region
        $region137: #{tpu_custom_call.1} parent=83 // pred_check
          %p1939 = pneg %p411
        $region138: #{tpu_custom_call.1} parent=83 // pred_check_branch
          %1941 = sbr.rel (%p1939) target = $region140
        $region139: #{tpu_custom_call.1} parent=83 // pred_region
          %1942 = dma.done [#allocation7], 128
        $region140: #{tpu_custom_call.1} parent=83 // pred_fallthru
          _
      $region84: #{tpu_custom_call.1} parent=5 // pred_fallthru
        _
      %p1943 = scmp.le.s32.totalorder 2, %s32
      // Predicated region
      $region141: #{tpu_custom_call.1} parent=5 // pred_check
        %p1944 = pneg %p1943
      $region142: #{tpu_custom_call.1} parent=5 // pred_check_branch
        %1946 = sbr.rel (%p1944) target = $region144
      $region143: #{tpu_custom_call.1} parent=5 // pred_region
        %s1947 = ssub.s32 %s32, 2
      $region144: #{tpu_custom_call.1} parent=5 // pred_fallthru
        _
    $region6: #{tpu_custom_call.1} parent=1 // loop_footer
      %s36 = sadd.s32 1, %s32
    $region7: #{tpu_custom_call.1} parent=1 // loop_footer_branch
      %31 = sbr.rel target = $region3
    $region8: #{tpu_custom_call.1} parent=1 // loop_exit
      _
    %1948 = vsyncpa [#allocation6], 1
    %s1949 = scalar_lea.sflag [#allocation6], 1
    %1950 = vsyncpa %s1949, 1
    %1951 = vsyncpa [#allocation9], 1
    %1952 = vsyncpa [#allocation15], 1
    %1953 = vsyncpa [#allocation18], 1
    %1954 = vsyncpa [#allocation7], 1
    %s1955 = scalar_lea.sflag [#allocation7], 1
    %1956 = vsyncpa %s1955, 1

</llo_original>
